<compile_context>
chip_gen: v7x
topology: tpu7x:2x2x1
jax: 0.10.0
libtpu: 0.0.40
codegen_flags: <defaults>
</compile_context>

<pallas_src>
import math
import functools

import jax
import jax.numpy as jnp
from jax.experimental import pallas as pl
from jax.experimental.pallas import tpu as pltpu


LANE = 128   # TPU lane granule (last axis)
SUB = 8      # f32 sublane granule (second-to-last axis)

VMEM_SPEC = pl.BlockSpec(memory_space=pltpu.MemorySpace.VMEM)


# ---------------------------------------------------------------------------
# Small helpers
# ---------------------------------------------------------------------------

def _pad2d(a, rows, cols):
    """Zero-pad a 2D array up to (rows, cols)."""
    out = jnp.zeros((rows, cols), jnp.float32)
    return out.at[: a.shape[0], : a.shape[1]].set(a.astype(jnp.float32))


def time_proj(t, time_embed_dim):
    # diffusers Timesteps(time_embed_dim, flip_sin_to_cos=True, downscale_freq_shift=0)
    half = time_embed_dim // 2
    exponent = -math.log(10000.0) * jnp.arange(half, dtype=jnp.float32) / float(half)
    freqs = jnp.exp(exponent)
    ang = t.astype(jnp.float32)[:, None] * freqs[None, :]
    return jnp.concatenate([jnp.cos(ang), jnp.sin(ang)], axis=-1)  # [cos, sin]


# ---------------------------------------------------------------------------
# Parameter construction (deterministic, synthetic, PyTorch-like init)
# ---------------------------------------------------------------------------

def _init_linear(key, fan_in, fan_out):
    k1, k2 = jax.random.split(key)
    bound = 1.0 / math.sqrt(fan_in)
    w = jax.random.uniform(k1, (fan_in, fan_out), jnp.float32, -bound, bound)
    b = jax.random.uniform(k2, (1, fan_out), jnp.float32, -bound, bound)
    return w, b


def _init_linear_ln(key, fan_in, fan_out):
    w, b = _init_linear(key, fan_in, fan_out)
    gamma = jnp.ones((1, fan_out), jnp.float32)
    beta = jnp.zeros((1, fan_out), jnp.float32)
    return w, b, gamma, beta


def init_params(key, embed_dim, cond_dim, hidden_dim, time_embed_dim):
    num_layers = len(hidden_dim)
    nb = num_layers - 1
    keys = iter(jax.random.split(key, 2 + 8 * nb))   # exact key budget
    params = {}
    params["input"] = _init_linear_ln(next(keys), embed_dim, hidden_dim[0])

    enc_time, enc_cond, enc_layer = [], [], []
    for i in range(nb):
        w1, b1 = _init_linear(next(keys), time_embed_dim, hidden_dim[i])
        w2, b2 = _init_linear(next(keys), hidden_dim[i], hidden_dim[i])
        enc_time.append((w1, b1, w2, b2))
        enc_cond.append(_init_linear(next(keys), cond_dim, hidden_dim[i]))
        enc_layer.append(_init_linear_ln(next(keys), hidden_dim[i], hidden_dim[i + 1]))
    params["enc_time"], params["enc_cond"], params["enc_layer"] = enc_time, enc_cond, enc_layer

    dec_time, dec_cond, dec_layer = [], [], []
    for i in range(num_layers - 1, 0, -1):
        w1, b1 = _init_linear(next(keys), time_embed_dim, hidden_dim[i])
        w2, b2 = _init_linear(next(keys), hidden_dim[i], hidden_dim[i])
        dec_time.append((w1, b1, w2, b2))
        dec_cond.append(_init_linear(next(keys), cond_dim, hidden_dim[i]))
        dec_layer.append(_init_linear_ln(next(keys), hidden_dim[i], hidden_dim[i - 1]))
    params["dec_time"], params["dec_cond"], params["dec_layer"] = dec_time, dec_cond, dec_layer

    params["output"] = _init_linear(next(keys), hidden_dim[0], embed_dim)
    return params


# ---------------------------------------------------------------------------
# Pack parameters into lane-padded, stacked arrays for the fused kernel
# ---------------------------------------------------------------------------

def pack_params(params, hidden_dim, embed_dim, cond_dim, time_embed_dim):
    assert max([embed_dim, cond_dim, time_embed_dim, *hidden_dim]) <= LANE, (
        "single-kernel scheme requires all feature dims <= 128")
    num_layers = len(hidden_dim)
    nb = num_layers - 1

    mats, vecs = [], []
    idx = {}

    def add_mat(w):
        mats.append(_pad2d(w, LANE, LANE))
        return len(mats) - 1

    def add_vec(v):
        vecs.append(_pad2d(v, 1, LANE))
        return len(vecs) - 1

    w, b, g, be = params["input"]
    idx["w_in"], idx["b_in"] = add_mat(w), add_vec(b)
    idx["g_in"], idx["be_in"] = add_vec(g), add_vec(be)

    # Batched cond / timestep-first-linear weights.  Block order: enc 0..nb-1,
    # then dec 0..nb-1 (decoder module-list order, i.e. i = L-1 .. 1).
    wc_cols, bc_cols, wt1_cols, bt1_cols = [], [], [], []
    for name in ("enc", "dec"):
        wt2_idx, bt2_idx, wl_idx, bl_idx, gl_idx, bel_idx = [], [], [], [], [], []
        for i in range(nb):
            wt1, bt1, wt2, bt2 = params[f"{name}_time"][i]
            wc, bc = params[f"{name}_cond"][i]
            wl, bl, gl, bel = params[f"{name}_layer"][i]
            wc_cols.append(_pad2d(wc, LANE, LANE))
            bc_cols.append(_pad2d(bc, 1, LANE))
            wt1_cols.append(_pad2d(wt1, LANE, LANE))
            bt1_cols.append(_pad2d(bt1, 1, LANE))
            wt2_idx.append(add_mat(wt2)); bt2_idx.append(add_vec(bt2))
            wl_idx.append(add_mat(wl)); bl_idx.append(add_vec(bl))
            gl_idx.append(add_vec(gl)); bel_idx.append(add_vec(bel))
        idx[f"{name}_wt2"], idx[f"{name}_bt2"] = wt2_idx, bt2_idx
        idx[f"{name}_w"], idx[f"{name}_b"] = wl_idx, bl_idx
        idx[f"{name}_g"], idx[f"{name}_be"] = gl_idx, bel_idx

    w, b = params["output"]
    idx["w_out"], idx["b_out"] = add_mat(w), add_vec(b)

    packed = dict(
        wc_all=jnp.concatenate(wc_cols, axis=1),     # (LANE, 2*nb*LANE)
        bc_all=jnp.concatenate(bc_cols, axis=1),     # (1,    2*nb*LANE)
        wt1_all=jnp.concatenate(wt1_cols, axis=1),   # (LANE, 2*nb*LANE)
        bt1_all=jnp.concatenate(bt1_cols, axis=1),   # (1,    2*nb*LANE)
        w_stack=jnp.stack(mats, axis=0),             # (n_mats, LANE, LANE)
        v_stack=jnp.stack(vecs, axis=0)[:, None, :][:, 0:1, :].reshape(
            len(vecs), 1, LANE),                     # (n_vecs, 1, LANE)
    )
    return packed, idx


# ---------------------------------------------------------------------------
# The single fused forward kernel
# ---------------------------------------------------------------------------

def _make_fused_kernel(idx, hidden_dim):
    num_layers = len(hidden_dim)
    nb = num_layers - 1

    def kernel(x_ref, tp_ref, c_ref, wc_ref, bc_ref, wt1_ref, bt1_ref,
               w_ref, v_ref, o_ref):
        f32 = jnp.float32

        def linear(h, wi, bi):
            return jnp.dot(h, w_ref[wi], preferred_element_type=f32) + v_ref[bi]

        def ln_silu(y, real_n, gi, bei):
            # Masked LayerNorm over the true feature width (padded lanes of y
            # are exactly zero by construction), then SiLU.
            mask = (jax.lax.broadcasted_iota(jnp.int32, y.shape, 1)
                    < real_n).astype(f32)
            inv_n = 1.0 / float(real_n)
            mean = jnp.sum(y, axis=-1, keepdims=True) * inv_n
            d = (y - mean) * mask
            var = jnp.sum(d * d, axis=-1, keepdims=True) * inv_n
            yn = d * jax.lax.rsqrt(var + 1e-5)
            yn = yn * v_ref[gi] + v_ref[bei]
            return yn * jax.nn.sigmoid(yn)

        # Batched conditioning projection and timestep-MLP first linear:
        # one lane-dense matmul each, covering all encoder + decoder layers.
        c_all = jnp.dot(c_ref[...], wc_ref[...],
                        preferred_element_type=f32) + bc_ref[...]
        h_all = jnp.dot(tp_ref[...], wt1_ref[...],
                        preferred_element_type=f32) + bt1_ref[...]
        h_all = h_all * jax.nn.sigmoid(h_all)          # SiLU inside TimestepEmbedding

        # ---- input layer: Linear -> LayerNorm -> SiLU
        x = ln_silu(linear(x_ref[...], idx["w_in"], idx["b_in"]),
                    hidden_dim[0], idx["g_in"], idx["be_in"])

        skips = []
        # ---- encoder
        for i in range(nb):
            skips.append(x)
            t_emb = linear(h_all[:, i * LANE:(i + 1) * LANE],
                           idx["enc_wt2"][i], idx["enc_bt2"][i])
            c_emb = c_all[:, i * LANE:(i + 1) * LANE]
            x = x + t_emb + c_emb
            x = ln_silu(linear(x, idx["enc_w"][i], idx["enc_b"][i]),
                        hidden_dim[i + 1], idx["enc_g"][i], idx["enc_be"][i])

        # ---- decoder (skip added AFTER the decode layer, as in the reference)
        for j in range(nb):
            blk = nb + j
            t_emb = linear(h_all[:, blk * LANE:(blk + 1) * LANE],
                           idx["dec_wt2"][j], idx["dec_bt2"][j])
            c_emb = c_all[:, blk * LANE:(blk + 1) * LANE]
            x = x + t_emb + c_emb
            out_dim = hidden_dim[num_layers - 2 - j]
            x = ln_silu(linear(x, idx["dec_w"][j], idx["dec_b"][j]),
                        out_dim, idx["dec_g"][j], idx["dec_be"][j])
            x = x + skips[-1 - j]

        # ---- output layer
        o_ref[...] = linear(x, idx["w_out"], idx["b_out"])

    return kernel


def forward(packed, x, t, c, *, idx, hidden_dim, embed_dim, time_embed_dim):
    B = x.shape[0]
    bpad = ((B + SUB - 1) // SUB) * SUB

    tp = time_proj(t, time_embed_dim)          # tiny sinusoidal projection (glue)
    x_p = _pad2d(x, bpad, LANE)
    tp_p = _pad2d(tp, bpad, LANE)
    c_p = _pad2d(c, bpad, LANE)

    args = (x_p, tp_p, c_p,
            packed["wc_all"], packed["bc_all"],
            packed["wt1_all"], packed["bt1_all"],
            packed["w_stack"], packed["v_stack"])
    total_bytes = sum(int(a.size) * 4 for a in args) + bpad * LANE * 4
    vmem_limit = int(min(64 << 20, max(16 << 20, 4 * total_bytes)))

    kernel = _make_fused_kernel(idx, tuple(hidden_dim))
    out = pl.pallas_call(
        kernel,
        out_shape=jax.ShapeDtypeStruct((bpad, LANE), jnp.float32),
        in_specs=[VMEM_SPEC] * len(args),
        out_specs=VMEM_SPEC,
        compiler_params=pltpu.CompilerParams(vmem_limit_bytes=vmem_limit),
    )(*args)
    return out[:B, :embed_dim]


# ---------------------------------------------------------------------------
# Pure-JAX reference (mirrors the PyTorch forward) for a correctness check
# ---------------------------------------------------------------------------

def reference_forward(params, x, t, c, *, hidden_dim, time_embed_dim):
    tp = time_proj(t, time_embed_dim)

    def lin(h, w, b):
        return h @ w + b

    def ln(h, g, be):
        mean = jnp.mean(h, axis=-1, keepdims=True)
        var = jnp.mean((h - mean) ** 2, axis=-1, keepdims=True)
        return (h - mean) * jax.lax.rsqrt(var + 1e-5) * g + be

    def silu(h):
        return h * jax.nn.sigmoid(h)

    def t_embed(p):
        w1, b1, w2, b2 = p
        return lin(silu(lin(tp, w1, b1)), w2, b2)

    w, b, g, be = params["input"]
    x = silu(ln(lin(x, w, b), g, be))
    nb = len(hidden_dim) - 1
    skips = []
    for i in range(nb):
        skips.append(x)
        x = x + t_embed(params["enc_time"][i]) + lin(c, *params["enc_cond"][i])
        w, b, g, be = params["enc_layer"][i]
        x = silu(ln(lin(x, w, b), g, be))
    for j in range(nb):
        x = x + t_embed(params["dec_time"][j]) + lin(c, *params["dec_cond"][j])
        w, b, g, be = params["dec_layer"][j]
        x = silu(ln(lin(x, w, b), g, be))
        x = x + skips[-1 - j]
    return lin(x, *params["output"])


# ---------------------------------------------------------------------------
# Main
# ---------------------------------------------------------------------------

if __name__ == "__main__":
    # Small shapes consistent with the module structure.
    embed_dim = 32
    cond_dim = 8
    hidden_dim = [32, 16, 8]
    time_embed_dim = 16
    batch = 4

    key = jax.random.PRNGKey(0)
    k_params, k_x, k_c = jax.random.split(key, 3)

    params = init_params(k_params, embed_dim, cond_dim, hidden_dim, time_embed_dim)
    packed, idx = pack_params(params, hidden_dim, embed_dim, cond_dim, time_embed_dim)

    x = jax.random.normal(k_x, (batch, embed_dim), jnp.float32)
    t = jnp.array([1, 10, 100, 500], dtype=jnp.int32)
    c = jax.random.normal(k_c, (batch, cond_dim), jnp.float32)

    fwd = jax.jit(functools.partial(
        forward, idx=idx, hidden_dim=tuple(hidden_dim),
        embed_dim=embed_dim, time_embed_dim=time_embed_dim))
    out = fwd(packed, x, t, c)
    jax.block_until_ready(out)

    assert out.shape == (batch, embed_dim), out.shape
    assert out.dtype == jnp.float32

    ref = reference_forward(params, x, t, c, hidden_dim=hidden_dim,
                            time_embed_dim=time_embed_dim)
    max_err = float(jnp.max(jnp.abs(out - ref)))
    assert max_err < 1e-3, f"max abs error vs reference: {max_err}"

    print("KERNEL_OK")
</pallas_src>

<mosaic_0001>
module attributes {stable_mosaic.version = 11 : i64} {
  func.func @kernel(%arg0: memref<8x128xf32, #tpu.memory_space<vmem>>, %arg1: memref<8x128xf32, #tpu.memory_space<vmem>>, %arg2: memref<8x128xf32, #tpu.memory_space<vmem>>, %arg3: memref<128x512xf32, #tpu.memory_space<vmem>>, %arg4: memref<1x512xf32, #tpu.memory_space<vmem>>, %arg5: memref<128x512xf32, #tpu.memory_space<vmem>>, %arg6: memref<1x512xf32, #tpu.memory_space<vmem>>, %arg7: memref<10x128x128xf32, #tpu.memory_space<vmem>>, %arg8: memref<20x1x128xf32, #tpu.memory_space<vmem>>, %arg9: memref<8x128xf32, #tpu.memory_space<vmem>>) attributes {dimension_semantics = [], scalar_prefetch = 0 : i64, scratch_operands = 0 : i64, tpu.core_type = #tpu.core_type<tc>} {
    %c0 = arith.constant 0 : index
    %c0_0 = arith.constant 0 : index
    %0 = vector.load %arg2[%c0, %c0_0] : memref<8x128xf32, #tpu.memory_space<vmem>>, vector<8x128xf32>
    %c0_1 = arith.constant 0 : index
    %c0_2 = arith.constant 0 : index
    %1 = vector.load %arg3[%c0_1, %c0_2] : memref<128x512xf32, #tpu.memory_space<vmem>>, vector<128x512xf32>
    %cst = arith.constant dense<0.000000e+00> : vector<8x512xf32>
    %2 = tpu.matmul %0, %1, %cst {dimension_numbers = #tpu.dot_dimension_numbers<[1], [0], [0], [1], [0, 0, 1, 1], [], []>} : vector<8x128xf32>, vector<128x512xf32>, vector<8x512xf32> -> vector<8x512xf32>
    %c0_3 = arith.constant 0 : index
    %c0_4 = arith.constant 0 : index
    %3 = vector.load %arg4[%c0_3, %c0_4] : memref<1x512xf32, #tpu.memory_space<vmem>>, vector<1x512xf32>
    %4 = vector.broadcast %3 : vector<1x512xf32> to vector<8x512xf32>
    %5 = arith.addf %2, %4 : vector<8x512xf32>
    %c0_5 = arith.constant 0 : index
    %c0_6 = arith.constant 0 : index
    %6 = vector.load %arg1[%c0_5, %c0_6] : memref<8x128xf32, #tpu.memory_space<vmem>>, vector<8x128xf32>
    %c0_7 = arith.constant 0 : index
    %c0_8 = arith.constant 0 : index
    %7 = vector.load %arg5[%c0_7, %c0_8] : memref<128x512xf32, #tpu.memory_space<vmem>>, vector<128x512xf32>
    %cst_9 = arith.constant dense<0.000000e+00> : vector<8x512xf32>
    %8 = tpu.matmul %6, %7, %cst_9 {dimension_numbers = #tpu.dot_dimension_numbers<[1], [0], [0], [1], [0, 0, 1, 1], [], []>} : vector<8x128xf32>, vector<128x512xf32>, vector<8x512xf32> -> vector<8x512xf32>
    %c0_10 = arith.constant 0 : index
    %c0_11 = arith.constant 0 : index
    %9 = vector.load %arg6[%c0_10, %c0_11] : memref<1x512xf32, #tpu.memory_space<vmem>>, vector<1x512xf32>
    %10 = vector.broadcast %9 : vector<1x512xf32> to vector<8x512xf32>
    %11 = arith.addf %8, %10 : vector<8x512xf32>
    %12 = arith.negf %11 : vector<8x512xf32>
    %13 = math.exp %12 : vector<8x512xf32>
    %cst_12 = arith.constant 1.000000e+00 : f32
    %14 = vector.broadcast %cst_12 : f32 to vector<8x512xf32>
    %15 = arith.addf %14, %13 : vector<8x512xf32>
    %16 = arith.divf %14, %15 : vector<8x512xf32>
    %17 = arith.mulf %11, %16 : vector<8x512xf32>
    %c0_13 = arith.constant 0 : index
    %c0_14 = arith.constant 0 : index
    %18 = vector.load %arg0[%c0_13, %c0_14] : memref<8x128xf32, #tpu.memory_space<vmem>>, vector<8x128xf32>
    %c0_15 = arith.constant 0 : index
    %c0_16 = arith.constant 0 : index
    %c0_17 = arith.constant 0 : index
    %19 = vector.load %arg7[%c0_15, %c0_16, %c0_17] : memref<10x128x128xf32, #tpu.memory_space<vmem>>, vector<1x128x128xf32>
    %20 = vector.shape_cast %19 : vector<1x128x128xf32> to vector<128x128xf32>
    %cst_18 = arith.constant dense<0.000000e+00> : vector<8x128xf32>
    %21 = tpu.matmul %18, %20, %cst_18 {dimension_numbers = #tpu.dot_dimension_numbers<[1], [0], [0], [1], [0, 0, 1, 1], [], []>} : vector<8x128xf32>, vector<128x128xf32>, vector<8x128xf32> -> vector<8x128xf32>
    %c0_19 = arith.constant 0 : index
    %c0_20 = arith.constant 0 : index
    %c0_21 = arith.constant 0 : index
    %22 = vector.load %arg8[%c0_19, %c0_20, %c0_21] : memref<20x1x128xf32, #tpu.memory_space<vmem>>, vector<1x1x128xf32>
    %23 = vector.shape_cast %22 : vector<1x1x128xf32> to vector<1x128xf32>
    %24 = vector.broadcast %23 : vector<1x128xf32> to vector<8x128xf32>
    %25 = arith.addf %21, %24 : vector<8x128xf32>
    %26 = tpu.iota {dimensions = array<i32: 1>} : vector<8x128xi32>
    %c32_i32 = arith.constant 32 : i32
    %27 = vector.broadcast %c32_i32 : i32 to vector<8x128xi32>
    %28 = arith.cmpi slt, %26, %27 : vector<8x128xi32>
    %29 = arith.extui %28 : vector<8x128xi1> to vector<8x128xi32>
    %30 = arith.sitofp %29 : vector<8x128xi32> to vector<8x128xf32>
    %cst_22 = arith.constant dense<0.000000e+00> : vector<8xf32>
    %31 = vector.multi_reduction <add>, %25, %cst_22 [1] : vector<8x128xf32> to vector<8xf32>
    %32 = vector.shape_cast %31 : vector<8xf32> to vector<8x1xf32>
    %cst_23 = arith.constant 3.125000e-02 : f32
    %33 = vector.broadcast %cst_23 : f32 to vector<8x1xf32>
    %34 = arith.mulf %32, %33 : vector<8x1xf32>
    %35 = vector.broadcast %34 : vector<8x1xf32> to vector<8x128xf32>
    %36 = arith.subf %25, %35 : vector<8x128xf32>
    %37 = arith.mulf %36, %30 : vector<8x128xf32>
    %38 = arith.mulf %37, %37 : vector<8x128xf32>
    %cst_24 = arith.constant dense<0.000000e+00> : vector<8xf32>
    %39 = vector.multi_reduction <add>, %38, %cst_24 [1] : vector<8x128xf32> to vector<8xf32>
    %40 = vector.shape_cast %39 : vector<8xf32> to vector<8x1xf32>
    %cst_25 = arith.constant 3.125000e-02 : f32
    %41 = vector.broadcast %cst_25 : f32 to vector<8x1xf32>
    %42 = arith.mulf %40, %41 : vector<8x1xf32>
    %cst_26 = arith.constant 9.99999974E-6 : f32
    %43 = vector.broadcast %cst_26 : f32 to vector<8x1xf32>
    %44 = arith.addf %42, %43 : vector<8x1xf32>
    %45 = math.rsqrt %44 : vector<8x1xf32>
    %46 = vector.broadcast %45 : vector<8x1xf32> to vector<8x128xf32>
    %47 = arith.mulf %37, %46 : vector<8x128xf32>
    %c1 = arith.constant 1 : index
    %c0_27 = arith.constant 0 : index
    %c0_28 = arith.constant 0 : index
    %48 = vector.load %arg8[%c1, %c0_27, %c0_28] : memref<20x1x128xf32, #tpu.memory_space<vmem>>, vector<1x1x128xf32>
    %49 = vector.shape_cast %48 : vector<1x1x128xf32> to vector<1x128xf32>
    %50 = vector.broadcast %49 : vector<1x128xf32> to vector<8x128xf32>
    %51 = arith.mulf %47, %50 : vector<8x128xf32>
    %c2 = arith.constant 2 : index
    %c0_29 = arith.constant 0 : index
    %c0_30 = arith.constant 0 : index
    %52 = vector.load %arg8[%c2, %c0_29, %c0_30] : memref<20x1x128xf32, #tpu.memory_space<vmem>>, vector<1x1x128xf32>
    %53 = vector.shape_cast %52 : vector<1x1x128xf32> to vector<1x128xf32>
    %54 = vector.broadcast %53 : vector<1x128xf32> to vector<8x128xf32>
    %55 = arith.addf %51, %54 : vector<8x128xf32>
    %56 = arith.negf %55 : vector<8x128xf32>
    %57 = math.exp %56 : vector<8x128xf32>
    %cst_31 = arith.constant 1.000000e+00 : f32
    %58 = vector.broadcast %cst_31 : f32 to vector<8x128xf32>
    %59 = arith.addf %58, %57 : vector<8x128xf32>
    %60 = arith.divf %58, %59 : vector<8x128xf32>
    %61 = arith.mulf %55, %60 : vector<8x128xf32>
    %62 = vector.extract_strided_slice %17 {offsets = [0, 0], sizes = [8, 128], strides = [1, 1]} : vector<8x512xf32> to vector<8x128xf32>
    %c1_32 = arith.constant 1 : index
    %c0_33 = arith.constant 0 : index
    %c0_34 = arith.constant 0 : index
    %63 = vector.load %arg7[%c1_32, %c0_33, %c0_34] : memref<10x128x128xf32, #tpu.memory_space<vmem>>, vector<1x128x128xf32>
    %64 = vector.shape_cast %63 : vector<1x128x128xf32> to vector<128x128xf32>
    %cst_35 = arith.constant dense<0.000000e+00> : vector<8x128xf32>
    %65 = tpu.matmul %62, %64, %cst_35 {dimension_numbers = #tpu.dot_dimension_numbers<[1], [0], [0], [1], [0, 0, 1, 1], [], []>} : vector<8x128xf32>, vector<128x128xf32>, vector<8x128xf32> -> vector<8x128xf32>
    %c3 = arith.constant 3 : index
    %c0_36 = arith.constant 0 : index
    %c0_37 = arith.constant 0 : index
    %66 = vector.load %arg8[%c3, %c0_36, %c0_37] : memref<20x1x128xf32, #tpu.memory_space<vmem>>, vector<1x1x128xf32>
    %67 = vector.shape_cast %66 : vector<1x1x128xf32> to vector<1x128xf32>
    %68 = vector.broadcast %67 : vector<1x128xf32> to vector<8x128xf32>
    %69 = arith.addf %65, %68 : vector<8x128xf32>
    %70 = vector.extract_strided_slice %5 {offsets = [0, 0], sizes = [8, 128], strides = [1, 1]} : vector<8x512xf32> to vector<8x128xf32>
    %71 = arith.addf %61, %69 : vector<8x128xf32>
    %72 = arith.addf %71, %70 : vector<8x128xf32>
    %c2_38 = arith.constant 2 : index
    %c0_39 = arith.constant 0 : index
    %c0_40 = arith.constant 0 : index
    %73 = vector.load %arg7[%c2_38, %c0_39, %c0_40] : memref<10x128x128xf32, #tpu.memory_space<vmem>>, vector<1x128x128xf32>
    %74 = vector.shape_cast %73 : vector<1x128x128xf32> to vector<128x128xf32>
    %cst_41 = arith.constant dense<0.000000e+00> : vector<8x128xf32>
    %75 = tpu.matmul %72, %74, %cst_41 {dimension_numbers = #tpu.dot_dimension_numbers<[1], [0], [0], [1], [0, 0, 1, 1], [], []>} : vector<8x128xf32>, vector<128x128xf32>, vector<8x128xf32> -> vector<8x128xf32>
    %c4 = arith.constant 4 : index
    %c0_42 = arith.constant 0 : index
    %c0_43 = arith.constant 0 : index
    %76 = vector.load %arg8[%c4, %c0_42, %c0_43] : memref<20x1x128xf32, #tpu.memory_space<vmem>>, vector<1x1x128xf32>
    %77 = vector.shape_cast %76 : vector<1x1x128xf32> to vector<1x128xf32>
    %78 = vector.broadcast %77 : vector<1x128xf32> to vector<8x128xf32>
    %79 = arith.addf %75, %78 : vector<8x128xf32>
    %80 = tpu.iota {dimensions = array<i32: 1>} : vector<8x128xi32>
    %c16_i32 = arith.constant 16 : i32
    %81 = vector.broadcast %c16_i32 : i32 to vector<8x128xi32>
    %82 = arith.cmpi slt, %80, %81 : vector<8x128xi32>
    %83 = arith.extui %82 : vector<8x128xi1> to vector<8x128xi32>
    %84 = arith.sitofp %83 : vector<8x128xi32> to vector<8x128xf32>
    %cst_44 = arith.constant dense<0.000000e+00> : vector<8xf32>
    %85 = vector.multi_reduction <add>, %79, %cst_44 [1] : vector<8x128xf32> to vector<8xf32>
    %86 = vector.shape_cast %85 : vector<8xf32> to vector<8x1xf32>
    %cst_45 = arith.constant 6.250000e-02 : f32
    %87 = vector.broadcast %cst_45 : f32 to vector<8x1xf32>
    %88 = arith.mulf %86, %87 : vector<8x1xf32>
    %89 = vector.broadcast %88 : vector<8x1xf32> to vector<8x128xf32>
    %90 = arith.subf %79, %89 : vector<8x128xf32>
    %91 = arith.mulf %90, %84 : vector<8x128xf32>
    %92 = arith.mulf %91, %91 : vector<8x128xf32>
    %cst_46 = arith.constant dense<0.000000e+00> : vector<8xf32>
    %93 = vector.multi_reduction <add>, %92, %cst_46 [1] : vector<8x128xf32> to vector<8xf32>
    %94 = vector.shape_cast %93 : vector<8xf32> to vector<8x1xf32>
    %cst_47 = arith.constant 6.250000e-02 : f32
    %95 = vector.broadcast %cst_47 : f32 to vector<8x1xf32>
    %96 = arith.mulf %94, %95 : vector<8x1xf32>
    %cst_48 = arith.constant 9.99999974E-6 : f32
    %97 = vector.broadcast %cst_48 : f32 to vector<8x1xf32>
    %98 = arith.addf %96, %97 : vector<8x1xf32>
    %99 = math.rsqrt %98 : vector<8x1xf32>
    %100 = vector.broadcast %99 : vector<8x1xf32> to vector<8x128xf32>
    %101 = arith.mulf %91, %100 : vector<8x128xf32>
    %c5 = arith.constant 5 : index
    %c0_49 = arith.constant 0 : index
    %c0_50 = arith.constant 0 : index
    %102 = vector.load %arg8[%c5, %c0_49, %c0_50] : memref<20x1x128xf32, #tpu.memory_space<vmem>>, vector<1x1x128xf32>
    %103 = vector.shape_cast %102 : vector<1x1x128xf32> to vector<1x128xf32>
    %104 = vector.broadcast %103 : vector<1x128xf32> to vector<8x128xf32>
    %105 = arith.mulf %101, %104 : vector<8x128xf32>
    %c6 = arith.constant 6 : index
    %c0_51 = arith.constant 0 : index
    %c0_52 = arith.constant 0 : index
    %106 = vector.load %arg8[%c6, %c0_51, %c0_52] : memref<20x1x128xf32, #tpu.memory_space<vmem>>, vector<1x1x128xf32>
    %107 = vector.shape_cast %106 : vector<1x1x128xf32> to vector<1x128xf32>
    %108 = vector.broadcast %107 : vector<1x128xf32> to vector<8x128xf32>
    %109 = arith.addf %105, %108 : vector<8x128xf32>
    %110 = arith.negf %109 : vector<8x128xf32>
    %111 = math.exp %110 : vector<8x128xf32>
    %cst_53 = arith.constant 1.000000e+00 : f32
    %112 = vector.broadcast %cst_53 : f32 to vector<8x128xf32>
    %113 = arith.addf %112, %111 : vector<8x128xf32>
    %114 = arith.divf %112, %113 : vector<8x128xf32>
    %115 = arith.mulf %109, %114 : vector<8x128xf32>
    %116 = vector.extract_strided_slice %17 {offsets = [0, 128], sizes = [8, 128], strides = [1, 1]} : vector<8x512xf32> to vector<8x128xf32>
    %c3_54 = arith.constant 3 : index
    %c0_55 = arith.constant 0 : index
    %c0_56 = arith.constant 0 : index
    %117 = vector.load %arg7[%c3_54, %c0_55, %c0_56] : memref<10x128x128xf32, #tpu.memory_space<vmem>>, vector<1x128x128xf32>
    %118 = vector.shape_cast %117 : vector<1x128x128xf32> to vector<128x128xf32>
    %cst_57 = arith.constant dense<0.000000e+00> : vector<8x128xf32>
    %119 = tpu.matmul %116, %118, %cst_57 {dimension_numbers = #tpu.dot_dimension_numbers<[1], [0], [0], [1], [0, 0, 1, 1], [], []>} : vector<8x128xf32>, vector<128x128xf32>, vector<8x128xf32> -> vector<8x128xf32>
    %c7 = arith.constant 7 : index
    %c0_58 = arith.constant 0 : index
    %c0_59 = arith.constant 0 : index
    %120 = vector.load %arg8[%c7, %c0_58, %c0_59] : memref<20x1x128xf32, #tpu.memory_space<vmem>>, vector<1x1x128xf32>
    %121 = vector.shape_cast %120 : vector<1x1x128xf32> to vector<1x128xf32>
    %122 = vector.broadcast %121 : vector<1x128xf32> to vector<8x128xf32>
    %123 = arith.addf %119, %122 : vector<8x128xf32>
    %124 = vector.extract_strided_slice %5 {offsets = [0, 128], sizes = [8, 128], strides = [1, 1]} : vector<8x512xf32> to vector<8x128xf32>
    %125 = arith.addf %115, %123 : vector<8x128xf32>
    %126 = arith.addf %125, %124 : vector<8x128xf32>
    %c4_60 = arith.constant 4 : index
    %c0_61 = arith.constant 0 : index
    %c0_62 = arith.constant 0 : index
    %127 = vector.load %arg7[%c4_60, %c0_61, %c0_62] : memref<10x128x128xf32, #tpu.memory_space<vmem>>, vector<1x128x128xf32>
    %128 = vector.shape_cast %127 : vector<1x128x128xf32> to vector<128x128xf32>
    %cst_63 = arith.constant dense<0.000000e+00> : vector<8x128xf32>
    %129 = tpu.matmul %126, %128, %cst_63 {dimension_numbers = #tpu.dot_dimension_numbers<[1], [0], [0], [1], [0, 0, 1, 1], [], []>} : vector<8x128xf32>, vector<128x128xf32>, vector<8x128xf32> -> vector<8x128xf32>
    %c8 = arith.constant 8 : index
    %c0_64 = arith.constant 0 : index
    %c0_65 = arith.constant 0 : index
    %130 = vector.load %arg8[%c8, %c0_64, %c0_65] : memref<20x1x128xf32, #tpu.memory_space<vmem>>, vector<1x1x128xf32>
    %131 = vector.shape_cast %130 : vector<1x1x128xf32> to vector<1x128xf32>
    %132 = vector.broadcast %131 : vector<1x128xf32> to vector<8x128xf32>
    %133 = arith.addf %129, %132 : vector<8x128xf32>
    %134 = tpu.iota {dimensions = array<i32: 1>} : vector<8x128xi32>
    %c8_i32 = arith.constant 8 : i32
    %135 = vector.broadcast %c8_i32 : i32 to vector<8x128xi32>
    %136 = arith.cmpi slt, %134, %135 : vector<8x128xi32>
    %137 = arith.extui %136 : vector<8x128xi1> to vector<8x128xi32>
    %138 = arith.sitofp %137 : vector<8x128xi32> to vector<8x128xf32>
    %cst_66 = arith.constant dense<0.000000e+00> : vector<8xf32>
    %139 = vector.multi_reduction <add>, %133, %cst_66 [1] : vector<8x128xf32> to vector<8xf32>
    %140 = vector.shape_cast %139 : vector<8xf32> to vector<8x1xf32>
    %cst_67 = arith.constant 1.250000e-01 : f32
    %141 = vector.broadcast %cst_67 : f32 to vector<8x1xf32>
    %142 = arith.mulf %140, %141 : vector<8x1xf32>
    %143 = vector.broadcast %142 : vector<8x1xf32> to vector<8x128xf32>
    %144 = arith.subf %133, %143 : vector<8x128xf32>
    %145 = arith.mulf %144, %138 : vector<8x128xf32>
    %146 = arith.mulf %145, %145 : vector<8x128xf32>
    %cst_68 = arith.constant dense<0.000000e+00> : vector<8xf32>
    %147 = vector.multi_reduction <add>, %146, %cst_68 [1] : vector<8x128xf32> to vector<8xf32>
    %148 = vector.shape_cast %147 : vector<8xf32> to vector<8x1xf32>
    %cst_69 = arith.constant 1.250000e-01 : f32
    %149 = vector.broadcast %cst_69 : f32 to vector<8x1xf32>
    %150 = arith.mulf %148, %149 : vector<8x1xf32>
    %cst_70 = arith.constant 9.99999974E-6 : f32
    %151 = vector.broadcast %cst_70 : f32 to vector<8x1xf32>
    %152 = arith.addf %150, %151 : vector<8x1xf32>
    %153 = math.rsqrt %152 : vector<8x1xf32>
    %154 = vector.broadcast %153 : vector<8x1xf32> to vector<8x128xf32>
    %155 = arith.mulf %145, %154 : vector<8x128xf32>
    %c9 = arith.constant 9 : index
    %c0_71 = arith.constant 0 : index
    %c0_72 = arith.constant 0 : index
    %156 = vector.load %arg8[%c9, %c0_71, %c0_72] : memref<20x1x128xf32, #tpu.memory_space<vmem>>, vector<1x1x128xf32>
    %157 = vector.shape_cast %156 : vector<1x1x128xf32> to vector<1x128xf32>
    %158 = vector.broadcast %157 : vector<1x128xf32> to vector<8x128xf32>
    %159 = arith.mulf %155, %158 : vector<8x128xf32>
    %c10 = arith.constant 10 : index
    %c0_73 = arith.constant 0 : index
    %c0_74 = arith.constant 0 : index
    %160 = vector.load %arg8[%c10, %c0_73, %c0_74] : memref<20x1x128xf32, #tpu.memory_space<vmem>>, vector<1x1x128xf32>
    %161 = vector.shape_cast %160 : vector<1x1x128xf32> to vector<1x128xf32>
    %162 = vector.broadcast %161 : vector<1x128xf32> to vector<8x128xf32>
    %163 = arith.addf %159, %162 : vector<8x128xf32>
    %164 = arith.negf %163 : vector<8x128xf32>
    %165 = math.exp %164 : vector<8x128xf32>
    %cst_75 = arith.constant 1.000000e+00 : f32
    %166 = vector.broadcast %cst_75 : f32 to vector<8x128xf32>
    %167 = arith.addf %166, %165 : vector<8x128xf32>
    %168 = arith.divf %166, %167 : vector<8x128xf32>
    %169 = arith.mulf %163, %168 : vector<8x128xf32>
    %170 = vector.extract_strided_slice %17 {offsets = [0, 256], sizes = [8, 128], strides = [1, 1]} : vector<8x512xf32> to vector<8x128xf32>
    %c5_76 = arith.constant 5 : index
    %c0_77 = arith.constant 0 : index
    %c0_78 = arith.constant 0 : index
    %171 = vector.load %arg7[%c5_76, %c0_77, %c0_78] : memref<10x128x128xf32, #tpu.memory_space<vmem>>, vector<1x128x128xf32>
    %172 = vector.shape_cast %171 : vector<1x128x128xf32> to vector<128x128xf32>
    %cst_79 = arith.constant dense<0.000000e+00> : vector<8x128xf32>
    %173 = tpu.matmul %170, %172, %cst_79 {dimension_numbers = #tpu.dot_dimension_numbers<[1], [0], [0], [1], [0, 0, 1, 1], [], []>} : vector<8x128xf32>, vector<128x128xf32>, vector<8x128xf32> -> vector<8x128xf32>
    %c11 = arith.constant 11 : index
    %c0_80 = arith.constant 0 : index
    %c0_81 = arith.constant 0 : index
    %174 = vector.load %arg8[%c11, %c0_80, %c0_81] : memref<20x1x128xf32, #tpu.memory_space<vmem>>, vector<1x1x128xf32>
    %175 = vector.shape_cast %174 : vector<1x1x128xf32> to vector<1x128xf32>
    %176 = vector.broadcast %175 : vector<1x128xf32> to vector<8x128xf32>
    %177 = arith.addf %173, %176 : vector<8x128xf32>
    %178 = vector.extract_strided_slice %5 {offsets = [0, 256], sizes = [8, 128], strides = [1, 1]} : vector<8x512xf32> to vector<8x128xf32>
    %179 = arith.addf %169, %177 : vector<8x128xf32>
    %180 = arith.addf %179, %178 : vector<8x128xf32>
    %c6_82 = arith.constant 6 : index
    %c0_83 = arith.constant 0 : index
    %c0_84 = arith.constant 0 : index
    %181 = vector.load %arg7[%c6_82, %c0_83, %c0_84] : memref<10x128x128xf32, #tpu.memory_space<vmem>>, vector<1x128x128xf32>
    %182 = vector.shape_cast %181 : vector<1x128x128xf32> to vector<128x128xf32>
    %cst_85 = arith.constant dense<0.000000e+00> : vector<8x128xf32>
    %183 = tpu.matmul %180, %182, %cst_85 {dimension_numbers = #tpu.dot_dimension_numbers<[1], [0], [0], [1], [0, 0, 1, 1], [], []>} : vector<8x128xf32>, vector<128x128xf32>, vector<8x128xf32> -> vector<8x128xf32>
    %c12 = arith.constant 12 : index
    %c0_86 = arith.constant 0 : index
    %c0_87 = arith.constant 0 : index
    %184 = vector.load %arg8[%c12, %c0_86, %c0_87] : memref<20x1x128xf32, #tpu.memory_space<vmem>>, vector<1x1x128xf32>
    %185 = vector.shape_cast %184 : vector<1x1x128xf32> to vector<1x128xf32>
    %186 = vector.broadcast %185 : vector<1x128xf32> to vector<8x128xf32>
    %187 = arith.addf %183, %186 : vector<8x128xf32>
    %188 = tpu.iota {dimensions = array<i32: 1>} : vector<8x128xi32>
    %c16_i32_88 = arith.constant 16 : i32
    %189 = vector.broadcast %c16_i32_88 : i32 to vector<8x128xi32>
    %190 = arith.cmpi slt, %188, %189 : vector<8x128xi32>
    %191 = arith.extui %190 : vector<8x128xi1> to vector<8x128xi32>
    %192 = arith.sitofp %191 : vector<8x128xi32> to vector<8x128xf32>
    %cst_89 = arith.constant dense<0.000000e+00> : vector<8xf32>
    %193 = vector.multi_reduction <add>, %187, %cst_89 [1] : vector<8x128xf32> to vector<8xf32>
    %194 = vector.shape_cast %193 : vector<8xf32> to vector<8x1xf32>
    %cst_90 = arith.constant 6.250000e-02 : f32
    %195 = vector.broadcast %cst_90 : f32 to vector<8x1xf32>
    %196 = arith.mulf %194, %195 : vector<8x1xf32>
    %197 = vector.broadcast %196 : vector<8x1xf32> to vector<8x128xf32>
    %198 = arith.subf %187, %197 : vector<8x128xf32>
    %199 = arith.mulf %198, %192 : vector<8x128xf32>
    %200 = arith.mulf %199, %199 : vector<8x128xf32>
    %cst_91 = arith.constant dense<0.000000e+00> : vector<8xf32>
    %201 = vector.multi_reduction <add>, %200, %cst_91 [1] : vector<8x128xf32> to vector<8xf32>
    %202 = vector.shape_cast %201 : vector<8xf32> to vector<8x1xf32>
    %cst_92 = arith.constant 6.250000e-02 : f32
    %203 = vector.broadcast %cst_92 : f32 to vector<8x1xf32>
    %204 = arith.mulf %202, %203 : vector<8x1xf32>
    %cst_93 = arith.constant 9.99999974E-6 : f32
    %205 = vector.broadcast %cst_93 : f32 to vector<8x1xf32>
    %206 = arith.addf %204, %205 : vector<8x1xf32>
    %207 = math.rsqrt %206 : vector<8x1xf32>
    %208 = vector.broadcast %207 : vector<8x1xf32> to vector<8x128xf32>
    %209 = arith.mulf %199, %208 : vector<8x128xf32>
    %c13 = arith.constant 13 : index
    %c0_94 = arith.constant 0 : index
    %c0_95 = arith.constant 0 : index
    %210 = vector.load %arg8[%c13, %c0_94, %c0_95] : memref<20x1x128xf32, #tpu.memory_space<vmem>>, vector<1x1x128xf32>
    %211 = vector.shape_cast %210 : vector<1x1x128xf32> to vector<1x128xf32>
    %212 = vector.broadcast %211 : vector<1x128xf32> to vector<8x128xf32>
    %213 = arith.mulf %209, %212 : vector<8x128xf32>
    %c14 = arith.constant 14 : index
    %c0_96 = arith.constant 0 : index
    %c0_97 = arith.constant 0 : index
    %214 = vector.load %arg8[%c14, %c0_96, %c0_97] : memref<20x1x128xf32, #tpu.memory_space<vmem>>, vector<1x1x128xf32>
    %215 = vector.shape_cast %214 : vector<1x1x128xf32> to vector<1x128xf32>
    %216 = vector.broadcast %215 : vector<1x128xf32> to vector<8x128xf32>
    %217 = arith.addf %213, %216 : vector<8x128xf32>
    %218 = arith.negf %217 : vector<8x128xf32>
    %219 = math.exp %218 : vector<8x128xf32>
    %cst_98 = arith.constant 1.000000e+00 : f32
    %220 = vector.broadcast %cst_98 : f32 to vector<8x128xf32>
    %221 = arith.addf %220, %219 : vector<8x128xf32>
    %222 = arith.divf %220, %221 : vector<8x128xf32>
    %223 = arith.mulf %217, %222 : vector<8x128xf32>
    %224 = arith.addf %223, %115 : vector<8x128xf32>
    %225 = vector.extract_strided_slice %17 {offsets = [0, 384], sizes = [8, 128], strides = [1, 1]} : vector<8x512xf32> to vector<8x128xf32>
    %c7_99 = arith.constant 7 : index
    %c0_100 = arith.constant 0 : index
    %c0_101 = arith.constant 0 : index
    %226 = vector.load %arg7[%c7_99, %c0_100, %c0_101] : memref<10x128x128xf32, #tpu.memory_space<vmem>>, vector<1x128x128xf32>
    %227 = vector.shape_cast %226 : vector<1x128x128xf32> to vector<128x128xf32>
    %cst_102 = arith.constant dense<0.000000e+00> : vector<8x128xf32>
    %228 = tpu.matmul %225, %227, %cst_102 {dimension_numbers = #tpu.dot_dimension_numbers<[1], [0], [0], [1], [0, 0, 1, 1], [], []>} : vector<8x128xf32>, vector<128x128xf32>, vector<8x128xf32> -> vector<8x128xf32>
    %c15 = arith.constant 15 : index
    %c0_103 = arith.constant 0 : index
    %c0_104 = arith.constant 0 : index
    %229 = vector.load %arg8[%c15, %c0_103, %c0_104] : memref<20x1x128xf32, #tpu.memory_space<vmem>>, vector<1x1x128xf32>
    %230 = vector.shape_cast %229 : vector<1x1x128xf32> to vector<1x128xf32>
    %231 = vector.broadcast %230 : vector<1x128xf32> to vector<8x128xf32>
    %232 = arith.addf %228, %231 : vector<8x128xf32>
    %233 = vector.extract_strided_slice %5 {offsets = [0, 384], sizes = [8, 128], strides = [1, 1]} : vector<8x512xf32> to vector<8x128xf32>
    %234 = arith.addf %224, %232 : vector<8x128xf32>
    %235 = arith.addf %234, %233 : vector<8x128xf32>
    %c8_105 = arith.constant 8 : index
    %c0_106 = arith.constant 0 : index
    %c0_107 = arith.constant 0 : index
    %236 = vector.load %arg7[%c8_105, %c0_106, %c0_107] : memref<10x128x128xf32, #tpu.memory_space<vmem>>, vector<1x128x128xf32>
    %237 = vector.shape_cast %236 : vector<1x128x128xf32> to vector<128x128xf32>
    %cst_108 = arith.constant dense<0.000000e+00> : vector<8x128xf32>
    %238 = tpu.matmul %235, %237, %cst_108 {dimension_numbers = #tpu.dot_dimension_numbers<[1], [0], [0], [1], [0, 0, 1, 1], [], []>} : vector<8x128xf32>, vector<128x128xf32>, vector<8x128xf32> -> vector<8x128xf32>
    %c16 = arith.constant 16 : index
    %c0_109 = arith.constant 0 : index
    %c0_110 = arith.constant 0 : index
    %239 = vector.load %arg8[%c16, %c0_109, %c0_110] : memref<20x1x128xf32, #tpu.memory_space<vmem>>, vector<1x1x128xf32>
    %240 = vector.shape_cast %239 : vector<1x1x128xf32> to vector<1x128xf32>
    %241 = vector.broadcast %240 : vector<1x128xf32> to vector<8x128xf32>
    %242 = arith.addf %238, %241 : vector<8x128xf32>
    %243 = tpu.iota {dimensions = array<i32: 1>} : vector<8x128xi32>
    %c32_i32_111 = arith.constant 32 : i32
    %244 = vector.broadcast %c32_i32_111 : i32 to vector<8x128xi32>
    %245 = arith.cmpi slt, %243, %244 : vector<8x128xi32>
    %246 = arith.extui %245 : vector<8x128xi1> to vector<8x128xi32>
    %247 = arith.sitofp %246 : vector<8x128xi32> to vector<8x128xf32>
    %cst_112 = arith.constant dense<0.000000e+00> : vector<8xf32>
    %248 = vector.multi_reduction <add>, %242, %cst_112 [1] : vector<8x128xf32> to vector<8xf32>
    %249 = vector.shape_cast %248 : vector<8xf32> to vector<8x1xf32>
    %cst_113 = arith.constant 3.125000e-02 : f32
    %250 = vector.broadcast %cst_113 : f32 to vector<8x1xf32>
    %251 = arith.mulf %249, %250 : vector<8x1xf32>
    %252 = vector.broadcast %251 : vector<8x1xf32> to vector<8x128xf32>
    %253 = arith.subf %242, %252 : vector<8x128xf32>
    %254 = arith.mulf %253, %247 : vector<8x128xf32>
    %255 = arith.mulf %254, %254 : vector<8x128xf32>
    %cst_114 = arith.constant dense<0.000000e+00> : vector<8xf32>
    %256 = vector.multi_reduction <add>, %255, %cst_114 [1] : vector<8x128xf32> to vector<8xf32>
    %257 = vector.shape_cast %256 : vector<8xf32> to vector<8x1xf32>
    %cst_115 = arith.constant 3.125000e-02 : f32
    %258 = vector.broadcast %cst_115 : f32 to vector<8x1xf32>
    %259 = arith.mulf %257, %258 : vector<8x1xf32>
    %cst_116 = arith.constant 9.99999974E-6 : f32
    %260 = vector.broadcast %cst_116 : f32 to vector<8x1xf32>
    %261 = arith.addf %259, %260 : vector<8x1xf32>
    %262 = math.rsqrt %261 : vector<8x1xf32>
    %263 = vector.broadcast %262 : vector<8x1xf32> to vector<8x128xf32>
    %264 = arith.mulf %254, %263 : vector<8x128xf32>
    %c17 = arith.constant 17 : index
    %c0_117 = arith.constant 0 : index
    %c0_118 = arith.constant 0 : index
    %265 = vector.load %arg8[%c17, %c0_117, %c0_118] : memref<20x1x128xf32, #tpu.memory_space<vmem>>, vector<1x1x128xf32>
    %266 = vector.shape_cast %265 : vector<1x1x128xf32> to vector<1x128xf32>
    %267 = vector.broadcast %266 : vector<1x128xf32> to vector<8x128xf32>
    %268 = arith.mulf %264, %267 : vector<8x128xf32>
    %c18 = arith.constant 18 : index
    %c0_119 = arith.constant 0 : index
    %c0_120 = arith.constant 0 : index
    %269 = vector.load %arg8[%c18, %c0_119, %c0_120] : memref<20x1x128xf32, #tpu.memory_space<vmem>>, vector<1x1x128xf32>
    %270 = vector.shape_cast %269 : vector<1x1x128xf32> to vector<1x128xf32>
    %271 = vector.broadcast %270 : vector<1x128xf32> to vector<8x128xf32>
    %272 = arith.addf %268, %271 : vector<8x128xf32>
    %273 = arith.negf %272 : vector<8x128xf32>
    %274 = math.exp %273 : vector<8x128xf32>
    %cst_121 = arith.constant 1.000000e+00 : f32
    %275 = vector.broadcast %cst_121 : f32 to vector<8x128xf32>
    %276 = arith.addf %275, %274 : vector<8x128xf32>
    %277 = arith.divf %275, %276 : vector<8x128xf32>
    %278 = arith.mulf %272, %277 : vector<8x128xf32>
    %279 = arith.addf %278, %61 : vector<8x128xf32>
    %c9_122 = arith.constant 9 : index
    %c0_123 = arith.constant 0 : index
    %c0_124 = arith.constant 0 : index
    %280 = vector.load %arg7[%c9_122, %c0_123, %c0_124] : memref<10x128x128xf32, #tpu.memory_space<vmem>>, vector<1x128x128xf32>
    %281 = vector.shape_cast %280 : vector<1x128x128xf32> to vector<128x128xf32>
    %cst_125 = arith.constant dense<0.000000e+00> : vector<8x128xf32>
    %282 = tpu.matmul %279, %281, %cst_125 {dimension_numbers = #tpu.dot_dimension_numbers<[1], [0], [0], [1], [0, 0, 1, 1], [], []>} : vector<8x128xf32>, vector<128x128xf32>, vector<8x128xf32> -> vector<8x128xf32>
    %c19 = arith.constant 19 : index
    %c0_126 = arith.constant 0 : index
    %c0_127 = arith.constant 0 : index
    %283 = vector.load %arg8[%c19, %c0_126, %c0_127] : memref<20x1x128xf32, #tpu.memory_space<vmem>>, vector<1x1x128xf32>
    %284 = vector.shape_cast %283 : vector<1x1x128xf32> to vector<1x128xf32>
    %285 = vector.broadcast %284 : vector<1x128xf32> to vector<8x128xf32>
    %286 = arith.addf %282, %285 : vector<8x128xf32>
    %c0_128 = arith.constant 0 : index
    %c0_129 = arith.constant 0 : index
    %287 = vector.load %arg9[%c0_128, %c0_129] : memref<8x128xf32, #tpu.memory_space<vmem>>, vector<8x128xf32>
    tpu.vector_store %arg9[%c0_128, %c0_129], %286 {strides = array<i32>} : memref<8x128xf32, #tpu.memory_space<vmem>>, vector<8x128xf32>,
    return
  }
}

</mosaic_0001>

<llo_original>
// kernel: forward.1
$region0: #{forward.1}
  #allocation0 [shape = 'u32[]', space=smem, size = 0x4, offset = 0x4, fixed_abs, tag = 'smem constant byte address 0x4 - core index']
  #allocation1 [shape = 'u32[144,128]{1,0:T(1,128)}', space=vmem, size = 0x12000, scoped, tag = 'internal scratch']
  %s0 = inlined_call_operand.vmem [shape: f32[8,128], index: 0, kind: input, shape index: {}]
  %s1 = inlined_call_operand.vmem [shape: f32[8,128], index: 1, kind: input, shape index: {}]
  %s2 = inlined_call_operand.vmem [shape: f32[8,128], index: 2, kind: input, shape index: {}]
  %s3 = inlined_call_operand.hbm [shape: f32[128,512], index: 3, kind: input, shape index: {}]
  %s4 = inlined_call_operand.vmem [shape: f32[1,512], index: 4, kind: input, shape index: {}]
  %s5 = inlined_call_operand.hbm [shape: f32[128,512], index: 5, kind: input, shape index: {}]
  %s6 = inlined_call_operand.vmem [shape: f32[1,512], index: 6, kind: input, shape index: {}]
  %s7 = inlined_call_operand.hbm [shape: f32[10,128,128], index: 7, kind: input, shape index: {}]
  %s8 = inlined_call_operand.vmem [shape: f32[20,1,128], index: 8, kind: input, shape index: {}]
  %s9 = inlined_call_operand.vmem [shape: f32[8,128], index: 9, kind: output, shape index: {}]
  %s10 = sld [smem:[#allocation0]]
  $region58: #{forward.1} parent=0
    _
  %s12 = ssub.s32 1, %s10
  %s13 = scalar_select 0, %s12, %s10
  $region1: #{forward.1} parent=0
    #allocation2 [shape = 'u8[262144]{0}', space=vmem, size = 0x40000, scoped, tag = 'input window, operand 3, single buffered']
    #allocation3 [shape = 's32[1]{0}', space=sflag, size = 0x4, scoped, tag = 'scoped memory for forward.1']
    #allocation4 [shape = 'u8[262144]{0}', space=vmem, size = 0x40000, scoped, tag = 'input window, operand 5, single buffered']
    #allocation5 [shape = 's32[1]{0}', space=sflag, size = 0x4, scoped, tag = 'scoped memory for forward.1']
    #allocation6 [shape = 'u8[655360]{0}', space=vmem, size = 0xa0000, scoped, tag = 'input window, operand 7, single buffered']
    %14 = vsyncpa [#allocation3], 0
    %15 = vsyncpa [#allocation5], 0
    // Predicated region
    $region2: #{forward.1} parent=1 // pred_check
      _
    $region3: #{forward.1} parent=1 // pred_check_branch
      %17 = sbr.rel (0) target = $region5
    $region4: #{forward.1} parent=1 // pred_region
      _
    $region5: #{forward.1} parent=1 // pred_fallthru
      _
    // Predicated region
    $region6: #{forward.1} parent=1 // pred_check
      _
    $region7: #{forward.1} parent=1 // pred_check_branch
      %19 = sbr.rel (0) target = $region9
    $region8: #{forward.1} parent=1 // pred_region
      _
    $region9: #{forward.1} parent=1 // pred_fallthru
      _
    // Predicated region
    $region10: #{forward.1} parent=1 // pred_check
      _
    $region11: #{forward.1} parent=1 // pred_check_branch
      %21 = sbr.rel (0) target = $region13
    $region12: #{forward.1} parent=1 // pred_region
      _
    $region13: #{forward.1} parent=1 // pred_fallthru
      _
    // Predicated region
    $region14: #{forward.1} parent=1 // pred_check
      _
    $region15: #{forward.1} parent=1 // pred_check_branch
      %23 = sbr.rel (0) target = $region17
    $region16: #{forward.1} parent=1 // pred_region
      %s25 = ssub.s32 8192, 8192
      %26 = vsyncadd [#allocation3], %s25
      %s27 = sshll.u32 [#allocation2], 4
      %s28 = int_to_ptr.vmem [resolvable:$true] %s27
      %33 = dma.hbm_to_vmem [thread:$0]  %s3, 8192, %s28, [#allocation3], 512, 512, 32
    $region17: #{forward.1} parent=1 // pred_fallthru
      _
    // Predicated region
    $region18: #{forward.1} parent=1 // pred_check
      _
    $region19: #{forward.1} parent=1 // pred_check_branch
      %35 = sbr.rel (0) target = $region21
    $region20: #{forward.1} parent=1 // pred_region
      _
    $region21: #{forward.1} parent=1 // pred_fallthru
      _
    // Predicated region
    $region22: #{forward.1} parent=1 // pred_check
      _
    $region23: #{forward.1} parent=1 // pred_check_branch
      %37 = sbr.rel (0) target = $region25
    $region24: #{forward.1} parent=1 // pred_region
      %s39 = ssub.s32 8192, 8192
      %40 = vsyncadd [#allocation5], %s39
      %s41 = sshll.u32 [#allocation4], 4
      %s42 = int_to_ptr.vmem [resolvable:$true] %s41
      %47 = dma.hbm_to_vmem [thread:$0]  %s5, 8192, %s42, [#allocation5], 512, 512, 32
    $region25: #{forward.1} parent=1 // pred_fallthru
      _
    // Predicated region
    $region26: #{forward.1} parent=1 // pred_check
      _
    $region27: #{forward.1} parent=1 // pred_check_branch
      %49 = sbr.rel (0) target = $region29
    $region28: #{forward.1} parent=1 // pred_region
      _
    $region29: #{forward.1} parent=1 // pred_fallthru
      _
    // Predicated region
    $region30: #{forward.1} parent=1 // pred_check
      _
    $region31: #{forward.1} parent=1 // pred_check_branch
      %51 = sbr.rel (0) target = $region33
    $region32: #{forward.1} parent=1 // pred_region
      %s53 = ssub.s32 20480, 20480
      %54 = vsyncadd [#allocation5], %s53
      %s55 = sshll.u32 [#allocation6], 4
      %s56 = int_to_ptr.vmem [resolvable:$true] %s55
      %61 = dma.hbm_to_vmem [thread:$0]  %s7, 20480, %s56, [#allocation5], 128, 128, 8
    $region33: #{forward.1} parent=1 // pred_fallthru
      _
    // Predicated region
    $region34: #{forward.1} parent=1 // pred_check
      _
    $region35: #{forward.1} parent=1 // pred_check_branch
      %63 = sbr.rel (0) target = $region37
    $region36: #{forward.1} parent=1 // pred_region
      _
    $region37: #{forward.1} parent=1 // pred_fallthru
      _
    // Predicated region
    $region38: #{forward.1} parent=1 // pred_check
      _
    $region39: #{forward.1} parent=1 // pred_check_branch
      %65 = sbr.rel (0) target = $region41
    $region40: #{forward.1} parent=1 // pred_region
      %66 = dma.done [#allocation3], 8192
    $region41: #{forward.1} parent=1 // pred_fallthru
      _
    // Predicated region
    $region42: #{forward.1} parent=1 // pred_check
      _
    $region43: #{forward.1} parent=1 // pred_check_branch
      %68 = sbr.rel (0) target = $region45
    $region44: #{forward.1} parent=1 // pred_region
      %69 = dma.done [#allocation5], 8192
    $region45: #{forward.1} parent=1 // pred_fallthru
      _
    // Predicated region
    $region46: #{forward.1} parent=1 // pred_check
      _
    $region47: #{forward.1} parent=1 // pred_check_branch
      %71 = sbr.rel (0) target = $region49
    $region48: #{forward.1} parent=1 // pred_region
      %72 = dma.done [#allocation5], 20480
    $region49: #{forward.1} parent=1 // pred_fallthru
      _
    %v73 = vld [vmem:[%s2] sm:$0xff]
    %v74 = vld [vmem:[#allocation2] sm:$0xff]
    %v75 = vld [vmem:[#allocation2 + $0x8] sm:$0xff]
    %v76 = vld [vmem:[#allocation2 + $0x10] sm:$0xff]
    %v77 = vld [vmem:[#allocation2 + $0x18] sm:$0xff]
    %v78 = vld [vmem:[#allocation2 + $0x20] sm:$0xff]
    %v79 = vld [vmem:[#allocation2 + $0x28] sm:$0xff]
    %v80 = vld [vmem:[#allocation2 + $0x30] sm:$0xff]
    %v81 = vld [vmem:[#allocation2 + $0x38] sm:$0xff]
    %v82 = vld [vmem:[#allocation2 + $0x40] sm:$0xff]
    %v83 = vld [vmem:[#allocation2 + $0x48] sm:$0xff]
    %v84 = vld [vmem:[#allocation2 + $0x50] sm:$0xff]
    %v85 = vld [vmem:[#allocation2 + $0x58] sm:$0xff]
    %v86 = vld [vmem:[#allocation2 + $0x60] sm:$0xff]
    %v87 = vld [vmem:[#allocation2 + $0x68] sm:$0xff]
    %v88 = vld [vmem:[#allocation2 + $0x70] sm:$0xff]
    %v89 = vld [vmem:[#allocation2 + $0x78] sm:$0xff]
    %v90 = vld [vmem:[#allocation2 + $0x80] sm:$0xff]
    %v91 = vld [vmem:[#allocation2 + $0x88] sm:$0xff]
    %v92 = vld [vmem:[#allocation2 + $0x90] sm:$0xff]
    %v93 = vld [vmem:[#allocation2 + $0x98] sm:$0xff]
    %v94 = vld [vmem:[#allocation2 + $0xa0] sm:$0xff]
    %v95 = vld [vmem:[#allocation2 + $0xa8] sm:$0xff]
    %v96 = vld [vmem:[#allocation2 + $0xb0] sm:$0xff]
    %v97 = vld [vmem:[#allocation2 + $0xb8] sm:$0xff]
    %v98 = vld [vmem:[#allocation2 + $0xc0] sm:$0xff]
    %v99 = vld [vmem:[#allocation2 + $0xc8] sm:$0xff]
    %v100 = vld [vmem:[#allocation2 + $0xd0] sm:$0xff]
    %v101 = vld [vmem:[#allocation2 + $0xd8] sm:$0xff]
    %v102 = vld [vmem:[#allocation2 + $0xe0] sm:$0xff]
    %v103 = vld [vmem:[#allocation2 + $0xe8] sm:$0xff]
    %v104 = vld [vmem:[#allocation2 + $0xf0] sm:$0xff]
    %v105 = vld [vmem:[#allocation2 + $0xf8] sm:$0xff]
    %v106 = vld [vmem:[#allocation2 + $0x100] sm:$0xff]
    %v107 = vld [vmem:[#allocation2 + $0x108] sm:$0xff]
    %v108 = vld [vmem:[#allocation2 + $0x110] sm:$0xff]
    %v109 = vld [vmem:[#allocation2 + $0x118] sm:$0xff]
    %v110 = vld [vmem:[#allocation2 + $0x120] sm:$0xff]
    %v111 = vld [vmem:[#allocation2 + $0x128] sm:$0xff]
    %v112 = vld [vmem:[#allocation2 + $0x130] sm:$0xff]
    %v113 = vld [vmem:[#allocation2 + $0x138] sm:$0xff]
    %v114 = vld [vmem:[#allocation2 + $0x140] sm:$0xff]
    %v115 = vld [vmem:[#allocation2 + $0x148] sm:$0xff]
    %v116 = vld [vmem:[#allocation2 + $0x150] sm:$0xff]
    %v117 = vld [vmem:[#allocation2 + $0x158] sm:$0xff]
    %v118 = vld [vmem:[#allocation2 + $0x160] sm:$0xff]
    %v119 = vld [vmem:[#allocation2 + $0x168] sm:$0xff]
    %v120 = vld [vmem:[#allocation2 + $0x170] sm:$0xff]
    %v121 = vld [vmem:[#allocation2 + $0x178] sm:$0xff]
    %v122 = vld [vmem:[#allocation2 + $0x180] sm:$0xff]
    %v123 = vld [vmem:[#allocation2 + $0x188] sm:$0xff]
    %v124 = vld [vmem:[#allocation2 + $0x190] sm:$0xff]
    %v125 = vld [vmem:[#allocation2 + $0x198] sm:$0xff]
    %v126 = vld [vmem:[#allocation2 + $0x1a0] sm:$0xff]
    %v127 = vld [vmem:[#allocation2 + $0x1a8] sm:$0xff]
    %v128 = vld [vmem:[#allocation2 + $0x1b0] sm:$0xff]
    %v129 = vld [vmem:[#allocation2 + $0x1b8] sm:$0xff]
    %v130 = vld [vmem:[#allocation2 + $0x1c0] sm:$0xff]
    %v131 = vld [vmem:[#allocation2 + $0x1c8] sm:$0xff]
    %v132 = vld [vmem:[#allocation2 + $0x1d0] sm:$0xff]
    %v133 = vld [vmem:[#allocation2 + $0x1d8] sm:$0xff]
    %v134 = vld [vmem:[#allocation2 + $0x1e0] sm:$0xff]
    %v135 = vld [vmem:[#allocation2 + $0x1e8] sm:$0xff]
    %v136 = vld [vmem:[#allocation2 + $0x1f0] sm:$0xff]
    %v137 = vld [vmem:[#allocation2 + $0x1f8] sm:$0xff]
    %v138 = vld [vmem:[%s4] sm:$0xf]
    %v140 = vlaneseq
    %v141 = vshrl.u32 %v140, 7
    %v142 = vsub.s32 0, %v141
    %v143 = vrot.slane %v138, %v142
    %v144 = vlaneseq
    %v145 = vshrl.u32 %v144, 7
    %v146 = vsub.s32 1, %v145
    %v147 = vrot.slane %v138, %v146
    %v148 = vlaneseq
    %v149 = vshrl.u32 %v148, 7
    %v150 = vsub.s32 2, %v149
    %v151 = vrot.slane %v138, %v150
    %v152 = vlaneseq
    %v153 = vshrl.u32 %v152, 7
    %v154 = vsub.s32 3, %v153
    %v155 = vrot.slane %v138, %v154
    %160 = vmatprep.subr.mxu0 %v75
    %161 = vmatpush1.msra.mxu0 %v74
    %162 = vmatprep.subr.mxu0 %v79
    %163 = vmatpush1.msra.mxu0 %v78
    %164 = vmatprep.subr.mxu0 %v83
    %165 = vmatpush1.msra.mxu0 %v82
    %166 = vmatprep.subr.mxu0 %v87
    %167 = vmatpush1.msra.mxu0 %v86
    %168 = vmatprep.subr.mxu0 %v91
    %169 = vmatpush1.msra.mxu0 %v90
    %170 = vmatprep.subr.mxu0 %v95
    %171 = vmatpush1.msra.mxu0 %v94
    %172 = vmatprep.subr.mxu0 %v99
    %173 = vmatpush1.msra.mxu0 %v98
    %174 = vmatprep.subr.mxu0 %v103
    %175 = vmatpush1.msra.mxu0 %v102
    %176 = vmatprep.subr.mxu0 %v107
    %177 = vmatpush1.msra.mxu0 %v106
    %178 = vmatprep.subr.mxu0 %v111
    %179 = vmatpush1.msra.mxu0 %v110
    %180 = vmatprep.subr.mxu0 %v115
    %181 = vmatpush1.msra.mxu0 %v114
    %182 = vmatprep.subr.mxu0 %v119
    %183 = vmatpush1.msra.mxu0 %v118
    %184 = vmatprep.subr.mxu0 %v123
    %185 = vmatpush1.msra.mxu0 %v122
    %186 = vmatprep.subr.mxu0 %v127
    %187 = vmatpush1.msra.mxu0 %v126
    %188 = vmatprep.subr.mxu0 %v131
    %189 = vmatpush1.msra.mxu0 %v130
    %190 = vmatprep.subr.mxu0 %v135
    %191 = vmatpush1.msra.mxu0 %v134
    %192 = vmatprep.subr.mxu0 0.0
    %193 = vmatpush1.msra.mxu0 0.0
    %194 = vmatprep.subr.mxu0 0.0
    %195 = vmatpush1.msra.mxu0 0.0
    %196 = vmatprep.subr.mxu0 0.0
    %197 = vmatpush1.msra.mxu0 0.0
    %198 = vmatprep.subr.mxu0 0.0
    %199 = vmatpush1.msra.mxu0 0.0
    %200 = vmatprep.subr.mxu0 0.0
    %201 = vmatpush1.msra.mxu0 0.0
    %202 = vmatprep.subr.mxu0 0.0
    %203 = vmatpush1.msra.mxu0 0.0
    %204 = vmatprep.subr.mxu0 0.0
    %205 = vmatpush1.msra.mxu0 0.0
    %206 = vmatprep.subr.mxu0 0.0
    %207 = vmatpush1.msra.mxu0 0.0
    %208 = vmatprep.subr.mxu0 0.0
    %209 = vmatpush1.msra.mxu0 0.0
    %210 = vmatprep.subr.mxu0 0.0
    %211 = vmatpush1.msra.mxu0 0.0
    %212 = vmatprep.subr.mxu0 0.0
    %213 = vmatpush1.msra.mxu0 0.0
    %214 = vmatprep.subr.mxu0 0.0
    %215 = vmatpush1.msra.mxu0 0.0
    %216 = vmatprep.subr.mxu0 0.0
    %217 = vmatpush1.msra.mxu0 0.0
    %218 = vmatprep.subr.mxu0 0.0
    %219 = vmatpush1.msra.mxu0 0.0
    %220 = vmatprep.subr.mxu0 0.0
    %221 = vmatpush1.msra.mxu0 0.0
    %222 = vmatprep.subr.mxu0 0.0
    %223 = vmatpush1.msra.mxu0 0.0
    %224 = vmatprep.mubr.f32.mxu0 0.0
    %225 = vmatmul.mubr.f32.gmra.mrb[0].mxu0 %v73
    %v226 = vpop.f32.mrb[0].mxu0
    %v227 = vadd.f32 %v143, %v226
    %v228 = vpop.f32.mrb[0].mxu0
    %v229 = vadd.f32 %v147, %v228
    %230 = vdwg.mxu0
    %231 = vmatprep.subr.mxu0 %v77
    %232 = vmatpush1.msra.mxu0 %v76
    %233 = vmatprep.subr.mxu0 %v81
    %234 = vmatpush1.msra.mxu0 %v80
    %235 = vmatprep.subr.mxu0 %v85
    %236 = vmatpush1.msra.mxu0 %v84
    %237 = vmatprep.subr.mxu0 %v89
    %238 = vmatpush1.msra.mxu0 %v88
    %239 = vmatprep.subr.mxu0 %v93
    %240 = vmatpush1.msra.mxu0 %v92
    %241 = vmatprep.subr.mxu0 %v97
    %242 = vmatpush1.msra.mxu0 %v96
    %243 = vmatprep.subr.mxu0 %v101
    %244 = vmatpush1.msra.mxu0 %v100
    %245 = vmatprep.subr.mxu0 %v105
    %246 = vmatpush1.msra.mxu0 %v104
    %247 = vmatprep.subr.mxu0 %v109
    %248 = vmatpush1.msra.mxu0 %v108
    %249 = vmatprep.subr.mxu0 %v113
    %250 = vmatpush1.msra.mxu0 %v112
    %251 = vmatprep.subr.mxu0 %v117
    %252 = vmatpush1.msra.mxu0 %v116
    %253 = vmatprep.subr.mxu0 %v121
    %254 = vmatpush1.msra.mxu0 %v120
    %255 = vmatprep.subr.mxu0 %v125
    %256 = vmatpush1.msra.mxu0 %v124
    %257 = vmatprep.subr.mxu0 %v129
    %258 = vmatpush1.msra.mxu0 %v128
    %259 = vmatprep.subr.mxu0 %v133
    %260 = vmatpush1.msra.mxu0 %v132
    %261 = vmatprep.subr.mxu0 %v137
    %262 = vmatpush1.msra.mxu0 %v136
    %263 = vmatprep.subr.mxu0 0.0
    %264 = vmatpush1.msra.mxu0 0.0
    %265 = vmatprep.subr.mxu0 0.0
    %266 = vmatpush1.msra.mxu0 0.0
    %267 = vmatprep.subr.mxu0 0.0
    %268 = vmatpush1.msra.mxu0 0.0
    %269 = vmatprep.subr.mxu0 0.0
    %270 = vmatpush1.msra.mxu0 0.0
    %271 = vmatprep.subr.mxu0 0.0
    %272 = vmatpush1.msra.mxu0 0.0
    %273 = vmatprep.subr.mxu0 0.0
    %274 = vmatpush1.msra.mxu0 0.0
    %275 = vmatprep.subr.mxu0 0.0
    %276 = vmatpush1.msra.mxu0 0.0
    %277 = vmatprep.subr.mxu0 0.0
    %278 = vmatpush1.msra.mxu0 0.0
    %279 = vmatprep.subr.mxu0 0.0
    %280 = vmatpush1.msra.mxu0 0.0
    %281 = vmatprep.subr.mxu0 0.0
    %282 = vmatpush1.msra.mxu0 0.0
    %283 = vmatprep.subr.mxu0 0.0
    %284 = vmatpush1.msra.mxu0 0.0
    %285 = vmatprep.subr.mxu0 0.0
    %286 = vmatpush1.msra.mxu0 0.0
    %287 = vmatprep.subr.mxu0 0.0
    %288 = vmatpush1.msra.mxu0 0.0
    %289 = vmatprep.subr.mxu0 0.0
    %290 = vmatpush1.msra.mxu0 0.0
    %291 = vmatprep.subr.mxu0 0.0
    %292 = vmatpush1.msra.mxu0 0.0
    %293 = vmatprep.subr.mxu0 0.0
    %294 = vmatpush1.msra.mxu0 0.0
    %295 = vmatprep.mubr.f32.mxu0 0.0
    %296 = vmatmul.mubr.f32.gmra.mrb[0].mxu0 %v73
    %v297 = vpop.f32.mrb[0].mxu0
    %v298 = vadd.f32 %v151, %v297
    %v299 = vpop.f32.mrb[0].mxu0
    %v300 = vadd.f32 %v155, %v299
    %301 = vdwg.mxu0
    %v302 = vld [vmem:[%s1] sm:$0xff]
    %v303 = vld [vmem:[#allocation4] sm:$0xff]
    %v304 = vld [vmem:[#allocation4 + $0x8] sm:$0xff]
    %v305 = vld [vmem:[#allocation4 + $0x10] sm:$0xff]
    %v306 = vld [vmem:[#allocation4 + $0x18] sm:$0xff]
    %v307 = vld [vmem:[#allocation4 + $0x20] sm:$0xff]
    %v308 = vld [vmem:[#allocation4 + $0x28] sm:$0xff]
    %v309 = vld [vmem:[#allocation4 + $0x30] sm:$0xff]
    %v310 = vld [vmem:[#allocation4 + $0x38] sm:$0xff]
    %v311 = vld [vmem:[#allocation4 + $0x40] sm:$0xff]
    %v312 = vld [vmem:[#allocation4 + $0x48] sm:$0xff]
    %v313 = vld [vmem:[#allocation4 + $0x50] sm:$0xff]
    %v314 = vld [vmem:[#allocation4 + $0x58] sm:$0xff]
    %v315 = vld [vmem:[#allocation4 + $0x60] sm:$0xff]
    %v316 = vld [vmem:[#allocation4 + $0x68] sm:$0xff]
    %v317 = vld [vmem:[#allocation4 + $0x70] sm:$0xff]
    %v318 = vld [vmem:[#allocation4 + $0x78] sm:$0xff]
    %v319 = vld [vmem:[#allocation4 + $0x80] sm:$0xff]
    %v320 = vld [vmem:[#allocation4 + $0x88] sm:$0xff]
    %v321 = vld [vmem:[#allocation4 + $0x90] sm:$0xff]
    %v322 = vld [vmem:[#allocation4 + $0x98] sm:$0xff]
    %v323 = vld [vmem:[#allocation4 + $0xa0] sm:$0xff]
    %v324 = vld [vmem:[#allocation4 + $0xa8] sm:$0xff]
    %v325 = vld [vmem:[#allocation4 + $0xb0] sm:$0xff]
    %v326 = vld [vmem:[#allocation4 + $0xb8] sm:$0xff]
    %v327 = vld [vmem:[#allocation4 + $0xc0] sm:$0xff]
    %v328 = vld [vmem:[#allocation4 + $0xc8] sm:$0xff]
    %v329 = vld [vmem:[#allocation4 + $0xd0] sm:$0xff]
    %v330 = vld [vmem:[#allocation4 + $0xd8] sm:$0xff]
    %v331 = vld [vmem:[#allocation4 + $0xe0] sm:$0xff]
    %v332 = vld [vmem:[#allocation4 + $0xe8] sm:$0xff]
    %v333 = vld [vmem:[#allocation4 + $0xf0] sm:$0xff]
    %v334 = vld [vmem:[#allocation4 + $0xf8] sm:$0xff]
    %v335 = vld [vmem:[#allocation4 + $0x100] sm:$0xff]
    %v336 = vld [vmem:[#allocation4 + $0x108] sm:$0xff]
    %v337 = vld [vmem:[#allocation4 + $0x110] sm:$0xff]
    %v338 = vld [vmem:[#allocation4 + $0x118] sm:$0xff]
    %v339 = vld [vmem:[#allocation4 + $0x120] sm:$0xff]
    %v340 = vld [vmem:[#allocation4 + $0x128] sm:$0xff]
    %v341 = vld [vmem:[#allocation4 + $0x130] sm:$0xff]
    %v342 = vld [vmem:[#allocation4 + $0x138] sm:$0xff]
    %v343 = vld [vmem:[#allocation4 + $0x140] sm:$0xff]
    %v344 = vld [vmem:[#allocation4 + $0x148] sm:$0xff]
    %v345 = vld [vmem:[#allocation4 + $0x150] sm:$0xff]
    %v346 = vld [vmem:[#allocation4 + $0x158] sm:$0xff]
    %v347 = vld [vmem:[#allocation4 + $0x160] sm:$0xff]
    %v348 = vld [vmem:[#allocation4 + $0x168] sm:$0xff]
    %v349 = vld [vmem:[#allocation4 + $0x170] sm:$0xff]
    %v350 = vld [vmem:[#allocation4 + $0x178] sm:$0xff]
    %v351 = vld [vmem:[#allocation4 + $0x180] sm:$0xff]
    %v352 = vld [vmem:[#allocation4 + $0x188] sm:$0xff]
    %v353 = vld [vmem:[#allocation4 + $0x190] sm:$0xff]
    %v354 = vld [vmem:[#allocation4 + $0x198] sm:$0xff]
    %v355 = vld [vmem:[#allocation4 + $0x1a0] sm:$0xff]
    %v356 = vld [vmem:[#allocation4 + $0x1a8] sm:$0xff]
    %v357 = vld [vmem:[#allocation4 + $0x1b0] sm:$0xff]
    %v358 = vld [vmem:[#allocation4 + $0x1b8] sm:$0xff]
    %v359 = vld [vmem:[#allocation4 + $0x1c0] sm:$0xff]
    %v360 = vld [vmem:[#allocation4 + $0x1c8] sm:$0xff]
    %v361 = vld [vmem:[#allocation4 + $0x1d0] sm:$0xff]
    %v362 = vld [vmem:[#allocation4 + $0x1d8] sm:$0xff]
    %v363 = vld [vmem:[#allocation4 + $0x1e0] sm:$0xff]
    %v364 = vld [vmem:[#allocation4 + $0x1e8] sm:$0xff]
    %v365 = vld [vmem:[#allocation4 + $0x1f0] sm:$0xff]
    %v366 = vld [vmem:[#allocation4 + $0x1f8] sm:$0xff]
    %v367 = vld [vmem:[%s6] sm:$0xf]
    %v369 = vlaneseq
    %v370 = vshrl.u32 %v369, 7
    %v371 = vsub.s32 0, %v370
    %v372 = vrot.slane %v367, %v371
    %v373 = vlaneseq
    %v374 = vshrl.u32 %v373, 7
    %v375 = vsub.s32 1, %v374
    %v376 = vrot.slane %v367, %v375
    %v377 = vlaneseq
    %v378 = vshrl.u32 %v377, 7
    %v379 = vsub.s32 2, %v378
    %v380 = vrot.slane %v367, %v379
    %v381 = vlaneseq
    %v382 = vshrl.u32 %v381, 7
    %v383 = vsub.s32 3, %v382
    %v384 = vrot.slane %v367, %v383
    %389 = vmatprep.subr.mxu0 %v304
    %390 = vmatpush1.msra.mxu0 %v303
    %391 = vmatprep.subr.mxu0 %v308
    %392 = vmatpush1.msra.mxu0 %v307
    %393 = vmatprep.subr.mxu0 %v312
    %394 = vmatpush1.msra.mxu0 %v311
    %395 = vmatprep.subr.mxu0 %v316
    %396 = vmatpush1.msra.mxu0 %v315
    %397 = vmatprep.subr.mxu0 %v320
    %398 = vmatpush1.msra.mxu0 %v319
    %399 = vmatprep.subr.mxu0 %v324
    %400 = vmatpush1.msra.mxu0 %v323
    %401 = vmatprep.subr.mxu0 %v328
    %402 = vmatpush1.msra.mxu0 %v327
    %403 = vmatprep.subr.mxu0 %v332
    %404 = vmatpush1.msra.mxu0 %v331
    %405 = vmatprep.subr.mxu0 %v336
    %406 = vmatpush1.msra.mxu0 %v335
    %407 = vmatprep.subr.mxu0 %v340
    %408 = vmatpush1.msra.mxu0 %v339
    %409 = vmatprep.subr.mxu0 %v344
    %410 = vmatpush1.msra.mxu0 %v343
    %411 = vmatprep.subr.mxu0 %v348
    %412 = vmatpush1.msra.mxu0 %v347
    %413 = vmatprep.subr.mxu0 %v352
    %414 = vmatpush1.msra.mxu0 %v351
    %415 = vmatprep.subr.mxu0 %v356
    %416 = vmatpush1.msra.mxu0 %v355
    %417 = vmatprep.subr.mxu0 %v360
    %418 = vmatpush1.msra.mxu0 %v359
    %419 = vmatprep.subr.mxu0 %v364
    %420 = vmatpush1.msra.mxu0 %v363
    %421 = vmatprep.subr.mxu0 0.0
    %422 = vmatpush1.msra.mxu0 0.0
    %423 = vmatprep.subr.mxu0 0.0
    %424 = vmatpush1.msra.mxu0 0.0
    %425 = vmatprep.subr.mxu0 0.0
    %426 = vmatpush1.msra.mxu0 0.0
    %427 = vmatprep.subr.mxu0 0.0
    %428 = vmatpush1.msra.mxu0 0.0
    %429 = vmatprep.subr.mxu0 0.0
    %430 = vmatpush1.msra.mxu0 0.0
    %431 = vmatprep.subr.mxu0 0.0
    %432 = vmatpush1.msra.mxu0 0.0
    %433 = vmatprep.subr.mxu0 0.0
    %434 = vmatpush1.msra.mxu0 0.0
    %435 = vmatprep.subr.mxu0 0.0
    %436 = vmatpush1.msra.mxu0 0.0
    %437 = vmatprep.subr.mxu0 0.0
    %438 = vmatpush1.msra.mxu0 0.0
    %439 = vmatprep.subr.mxu0 0.0
    %440 = vmatpush1.msra.mxu0 0.0
    %441 = vmatprep.subr.mxu0 0.0
    %442 = vmatpush1.msra.mxu0 0.0
    %443 = vmatprep.subr.mxu0 0.0
    %444 = vmatpush1.msra.mxu0 0.0
    %445 = vmatprep.subr.mxu0 0.0
    %446 = vmatpush1.msra.mxu0 0.0
    %447 = vmatprep.subr.mxu0 0.0
    %448 = vmatpush1.msra.mxu0 0.0
    %449 = vmatprep.subr.mxu0 0.0
    %450 = vmatpush1.msra.mxu0 0.0
    %451 = vmatprep.subr.mxu0 0.0
    %452 = vmatpush1.msra.mxu0 0.0
    %453 = vmatprep.mubr.f32.mxu0 0.0
    %454 = vmatmul.mubr.f32.gmra.mrb[0].mxu0 %v302
    %v455 = vpop.f32.mrb[0].mxu0
    %v456 = vadd.f32 %v372, %v455
    %v457 = vpop.f32.mrb[0].mxu0
    %v458 = vadd.f32 %v376, %v457
    %459 = vdwg.mxu0
    %460 = vmatprep.subr.mxu0 %v306
    %461 = vmatpush1.msra.mxu0 %v305
    %462 = vmatprep.subr.mxu0 %v310
    %463 = vmatpush1.msra.mxu0 %v309
    %464 = vmatprep.subr.mxu0 %v314
    %465 = vmatpush1.msra.mxu0 %v313
    %466 = vmatprep.subr.mxu0 %v318
    %467 = vmatpush1.msra.mxu0 %v317
    %468 = vmatprep.subr.mxu0 %v322
    %469 = vmatpush1.msra.mxu0 %v321
    %470 = vmatprep.subr.mxu0 %v326
    %471 = vmatpush1.msra.mxu0 %v325
    %472 = vmatprep.subr.mxu0 %v330
    %473 = vmatpush1.msra.mxu0 %v329
    %474 = vmatprep.subr.mxu0 %v334
    %475 = vmatpush1.msra.mxu0 %v333
    %476 = vmatprep.subr.mxu0 %v338
    %477 = vmatpush1.msra.mxu0 %v337
    %478 = vmatprep.subr.mxu0 %v342
    %479 = vmatpush1.msra.mxu0 %v341
    %480 = vmatprep.subr.mxu0 %v346
    %481 = vmatpush1.msra.mxu0 %v345
    %482 = vmatprep.subr.mxu0 %v350
    %483 = vmatpush1.msra.mxu0 %v349
    %484 = vmatprep.subr.mxu0 %v354
    %485 = vmatpush1.msra.mxu0 %v353
    %486 = vmatprep.subr.mxu0 %v358
    %487 = vmatpush1.msra.mxu0 %v357
    %488 = vmatprep.subr.mxu0 %v362
    %489 = vmatpush1.msra.mxu0 %v361
    %490 = vmatprep.subr.mxu0 %v366
    %491 = vmatpush1.msra.mxu0 %v365
    %492 = vmatprep.subr.mxu0 0.0
    %493 = vmatpush1.msra.mxu0 0.0
    %494 = vmatprep.subr.mxu0 0.0
    %495 = vmatpush1.msra.mxu0 0.0
    %496 = vmatprep.subr.mxu0 0.0
    %497 = vmatpush1.msra.mxu0 0.0
    %498 = vmatprep.subr.mxu0 0.0
    %499 = vmatpush1.msra.mxu0 0.0
    %500 = vmatprep.subr.mxu0 0.0
    %501 = vmatpush1.msra.mxu0 0.0
    %502 = vmatprep.subr.mxu0 0.0
    %503 = vmatpush1.msra.mxu0 0.0
    %504 = vmatprep.subr.mxu0 0.0
    %505 = vmatpush1.msra.mxu0 0.0
    %506 = vmatprep.subr.mxu0 0.0
    %507 = vmatpush1.msra.mxu0 0.0
    %508 = vmatprep.subr.mxu0 0.0
    %509 = vmatpush1.msra.mxu0 0.0
    %510 = vmatprep.subr.mxu0 0.0
    %511 = vmatpush1.msra.mxu0 0.0
    %512 = vmatprep.subr.mxu0 0.0
    %513 = vmatpush1.msra.mxu0 0.0
    %514 = vmatprep.subr.mxu0 0.0
    %515 = vmatpush1.msra.mxu0 0.0
    %516 = vmatprep.subr.mxu0 0.0
    %517 = vmatpush1.msra.mxu0 0.0
    %518 = vmatprep.subr.mxu0 0.0
    %519 = vmatpush1.msra.mxu0 0.0
    %520 = vmatprep.subr.mxu0 0.0
    %521 = vmatpush1.msra.mxu0 0.0
    %522 = vmatprep.subr.mxu0 0.0
    %523 = vmatpush1.msra.mxu0 0.0
    %524 = vmatprep.mubr.f32.mxu0 0.0
    %525 = vmatmul.mubr.f32.gmra.mrb[0].mxu0 %v302
    %v526 = vpop.f32.mrb[0].mxu0
    %v527 = vadd.f32 %v380, %v526
    %v528 = vpop.f32.mrb[0].mxu0
    %v529 = vadd.f32 %v384, %v528
    %530 = vdwg.mxu0
    %v531 = vxor.u32 %v456, 2147483648
    %v532 = vxor.u32 %v458, 2147483648
    %v533 = vxor.u32 %v527, 2147483648
    %v534 = vxor.u32 %v529, 2147483648
    %v535 = vmul.f32 %v531, 1.442695
    %v536 = vpow.pop %v535
    %v537 = vmul.f32 %v532, 1.442695
    %v538 = vpow.pop %v537
    %v539 = vmul.f32 %v533, 1.442695
    %v540 = vpow.pop %v539
    %v541 = vmul.f32 %v534, 1.442695
    %v542 = vpow.pop %v541
    %v543 = vadd.f32 %v536, 1.0
    %v544 = vadd.f32 %v538, 1.0
    %v545 = vadd.f32 %v540, 1.0
    %v546 = vadd.f32 %v542, 1.0
    %v547 = vrcp.pop %v543
    %v548 = vmul.f32 1.0, %v547
    %v549 = vrcp.pop %v544
    %v550 = vmul.f32 1.0, %v549
    %v551 = vrcp.pop %v545
    %v552 = vmul.f32 1.0, %v551
    %v553 = vrcp.pop %v546
    %v554 = vmul.f32 1.0, %v553
    %v555 = vmul.f32 %v456, %v548
    %v556 = vmul.f32 %v458, %v550
    %v557 = vmul.f32 %v527, %v552
    %v558 = vmul.f32 %v529, %v554
    %v559 = vld [vmem:[%s0] sm:$0xff]
    %v560 = vld [vmem:[#allocation6] sm:$0xff]
    %v561 = vld [vmem:[#allocation6 + $0x8] sm:$0xff]
    %v562 = vld [vmem:[#allocation6 + $0x10] sm:$0xff]
    %v563 = vld [vmem:[#allocation6 + $0x18] sm:$0xff]
    %v564 = vld [vmem:[#allocation6 + $0x20] sm:$0xff]
    %v565 = vld [vmem:[#allocation6 + $0x28] sm:$0xff]
    %v566 = vld [vmem:[#allocation6 + $0x30] sm:$0xff]
    %v567 = vld [vmem:[#allocation6 + $0x38] sm:$0xff]
    %v568 = vld [vmem:[#allocation6 + $0x40] sm:$0xff]
    %v569 = vld [vmem:[#allocation6 + $0x48] sm:$0xff]
    %v570 = vld [vmem:[#allocation6 + $0x50] sm:$0xff]
    %v571 = vld [vmem:[#allocation6 + $0x58] sm:$0xff]
    %v572 = vld [vmem:[#allocation6 + $0x60] sm:$0xff]
    %v573 = vld [vmem:[#allocation6 + $0x68] sm:$0xff]
    %v574 = vld [vmem:[#allocation6 + $0x70] sm:$0xff]
    %v575 = vld [vmem:[#allocation6 + $0x78] sm:$0xff]
    %v576 = vld [vmem:[%s8] sm:$0x1]
    %v578 = vlaneseq
    %v579 = vshrl.u32 %v578, 7
    %v580 = vsub.s32 0, %v579
    %v581 = vrot.slane %v576, %v580
    %583 = vmatprep.subr.mxu0 0.0
    %584 = vmatpush1.msra.mxu0 %v560
    %585 = vmatprep.subr.mxu0 0.0
    %586 = vmatpush1.msra.mxu0 %v561
    %587 = vmatprep.subr.mxu0 0.0
    %588 = vmatpush1.msra.mxu0 %v562
    %589 = vmatprep.subr.mxu0 0.0
    %590 = vmatpush1.msra.mxu0 %v563
    %591 = vmatprep.subr.mxu0 0.0
    %592 = vmatpush1.msra.mxu0 %v564
    %593 = vmatprep.subr.mxu0 0.0
    %594 = vmatpush1.msra.mxu0 %v565
    %595 = vmatprep.subr.mxu0 0.0
    %596 = vmatpush1.msra.mxu0 %v566
    %597 = vmatprep.subr.mxu0 0.0
    %598 = vmatpush1.msra.mxu0 %v567
    %599 = vmatprep.subr.mxu0 0.0
    %600 = vmatpush1.msra.mxu0 %v568
    %601 = vmatprep.subr.mxu0 0.0
    %602 = vmatpush1.msra.mxu0 %v569
    %603 = vmatprep.subr.mxu0 0.0
    %604 = vmatpush1.msra.mxu0 %v570
    %605 = vmatprep.subr.mxu0 0.0
    %606 = vmatpush1.msra.mxu0 %v571
    %607 = vmatprep.subr.mxu0 0.0
    %608 = vmatpush1.msra.mxu0 %v572
    %609 = vmatprep.subr.mxu0 0.0
    %610 = vmatpush1.msra.mxu0 %v573
    %611 = vmatprep.subr.mxu0 0.0
    %612 = vmatpush1.msra.mxu0 %v574
    %613 = vmatprep.subr.mxu0 0.0
    %614 = vmatpush1.msra.mxu0 %v575
    %615 = vmatprep.subr.mxu0 0.0
    %616 = vmatpush1.msra.mxu0 0.0
    %617 = vmatprep.subr.mxu0 0.0
    %618 = vmatpush1.msra.mxu0 0.0
    %619 = vmatprep.subr.mxu0 0.0
    %620 = vmatpush1.msra.mxu0 0.0
    %621 = vmatprep.subr.mxu0 0.0
    %622 = vmatpush1.msra.mxu0 0.0
    %623 = vmatprep.subr.mxu0 0.0
    %624 = vmatpush1.msra.mxu0 0.0
    %625 = vmatprep.subr.mxu0 0.0
    %626 = vmatpush1.msra.mxu0 0.0
    %627 = vmatprep.subr.mxu0 0.0
    %628 = vmatpush1.msra.mxu0 0.0
    %629 = vmatprep.subr.mxu0 0.0
    %630 = vmatpush1.msra.mxu0 0.0
    %631 = vmatprep.subr.mxu0 0.0
    %632 = vmatpush1.msra.mxu0 0.0
    %633 = vmatprep.subr.mxu0 0.0
    %634 = vmatpush1.msra.mxu0 0.0
    %635 = vmatprep.subr.mxu0 0.0
    %636 = vmatpush1.msra.mxu0 0.0
    %637 = vmatprep.subr.mxu0 0.0
    %638 = vmatpush1.msra.mxu0 0.0
    %639 = vmatprep.subr.mxu0 0.0
    %640 = vmatpush1.msra.mxu0 0.0
    %641 = vmatprep.subr.mxu0 0.0
    %642 = vmatpush1.msra.mxu0 0.0
    %643 = vmatprep.subr.mxu0 0.0
    %644 = vmatpush1.msra.mxu0 0.0
    %645 = vmatprep.subr.mxu0 0.0
    %646 = vmatpush1.msra.mxu0 0.0
    %647 = vmatprep.mubr.f32.mxu0 0.0
    %648 = vmatmul.mubr.f32.gmra.mrb[0].mxu0 %v559
    %v649 = vpop.f32.mrb[0].mxu0
    %v650 = vadd.f32 %v581, %v649
    %v651 = vpop.f32.mrb[0].mxu0
    %652 = vdwg.mxu0
    %v653 = vlaneseq
    %v654 = vand.u32 %v653, 127
    %vm655 = vcmp.lt.s32.totalorder %v654, 32
    %v656 = vsel %vm655, 1, 0
    %v657 = vcvt.s32.f32 %v656
    %658 = vadd.xlane.f32.xlu0 %v650
    %v659 = vpop.xlane.xlu0 %658
    %v660 = vmul.f32 %v659, 0.03125
    %v661 = vsub.f32 %v650, %v660
    %v662 = vmul.f32 %v661, %v657
    %v663 = vmul.f32 %v662, %v662
    %664 = vadd.xlane.f32.xlu0 %v663
    %v665 = vpop.xlane.xlu0 %664
    %v666 = vmul.f32 %v665, 0.03125
    %v667 = vadd.f32 %v666, 1e-05
    %v668 = vrsqrt.pop %v667
    %v669 = vmul.f32 %v662, %v668
    %s670 = scalar_lea.vmem %s8, 1
    %v671 = vld [vmem:[%s670] sm:$0x1]
    %v673 = vlaneseq
    %v674 = vshrl.u32 %v673, 7
    %v675 = vsub.s32 0, %v674
    %v676 = vrot.slane %v671, %v675
    %v678 = vmul.f32 %v669, %v676
    %s679 = scalar_lea.vmem %s8, 2
    %v680 = vld [vmem:[%s679] sm:$0x1]
    %v682 = vlaneseq
    %v683 = vshrl.u32 %v682, 7
    %v684 = vsub.s32 0, %v683
    %v685 = vrot.slane %v680, %v684
    %v687 = vadd.f32 %v678, %v685
    %v688 = vxor.u32 %v687, 2147483648
    %v689 = vmul.f32 %v688, 1.442695
    %v690 = vpow.pop %v689
    %v691 = vadd.f32 %v690, 1.0
    %v692 = vrcp.pop %v691
    %v693 = vmul.f32 1.0, %v692
    %v694 = vmul.f32 %v687, %v693
    %s695 = scalar_lea.vmem [#allocation6], 128
    %v696 = vld [vmem:[%s695] sm:$0xff]
    %v697 = vld [vmem:[%s695 + $0x8] sm:$0xff]
    %v698 = vld [vmem:[%s695 + $0x10] sm:$0xff]
    %v699 = vld [vmem:[%s695 + $0x18] sm:$0xff]
    %v700 = vld [vmem:[%s695 + $0x20] sm:$0xff]
    %v701 = vld [vmem:[%s695 + $0x28] sm:$0xff]
    %v702 = vld [vmem:[%s695 + $0x30] sm:$0xff]
    %v703 = vld [vmem:[%s695 + $0x38] sm:$0xff]
    %v704 = vld [vmem:[%s695 + $0x40] sm:$0xff]
    %v705 = vld [vmem:[%s695 + $0x48] sm:$0xff]
    %v706 = vld [vmem:[%s695 + $0x50] sm:$0xff]
    %v707 = vld [vmem:[%s695 + $0x58] sm:$0xff]
    %v708 = vld [vmem:[%s695 + $0x60] sm:$0xff]
    %v709 = vld [vmem:[%s695 + $0x68] sm:$0xff]
    %v710 = vld [vmem:[%s695 + $0x70] sm:$0xff]
    %v711 = vld [vmem:[%s695 + $0x78] sm:$0xff]
    %s712 = scalar_lea.vmem %s8, 3
    %v713 = vld [vmem:[%s712] sm:$0x1]
    %v715 = vlaneseq
    %v716 = vshrl.u32 %v715, 7
    %v717 = vsub.s32 0, %v716
    %v718 = vrot.slane %v713, %v717
    %720 = vmatprep.subr.mxu0 0.0
    %721 = vmatpush1.msra.mxu0 %v696
    %722 = vmatprep.subr.mxu0 0.0
    %723 = vmatpush1.msra.mxu0 %v697
    %724 = vmatprep.subr.mxu0 0.0
    %725 = vmatpush1.msra.mxu0 %v698
    %726 = vmatprep.subr.mxu0 0.0
    %727 = vmatpush1.msra.mxu0 %v699
    %728 = vmatprep.subr.mxu0 0.0
    %729 = vmatpush1.msra.mxu0 %v700
    %730 = vmatprep.subr.mxu0 0.0
    %731 = vmatpush1.msra.mxu0 %v701
    %732 = vmatprep.subr.mxu0 0.0
    %733 = vmatpush1.msra.mxu0 %v702
    %734 = vmatprep.subr.mxu0 0.0
    %735 = vmatpush1.msra.mxu0 %v703
    %736 = vmatprep.subr.mxu0 0.0
    %737 = vmatpush1.msra.mxu0 %v704
    %738 = vmatprep.subr.mxu0 0.0
    %739 = vmatpush1.msra.mxu0 %v705
    %740 = vmatprep.subr.mxu0 0.0
    %741 = vmatpush1.msra.mxu0 %v706
    %742 = vmatprep.subr.mxu0 0.0
    %743 = vmatpush1.msra.mxu0 %v707
    %744 = vmatprep.subr.mxu0 0.0
    %745 = vmatpush1.msra.mxu0 %v708
    %746 = vmatprep.subr.mxu0 0.0
    %747 = vmatpush1.msra.mxu0 %v709
    %748 = vmatprep.subr.mxu0 0.0
    %749 = vmatpush1.msra.mxu0 %v710
    %750 = vmatprep.subr.mxu0 0.0
    %751 = vmatpush1.msra.mxu0 %v711
    %752 = vmatprep.subr.mxu0 0.0
    %753 = vmatpush1.msra.mxu0 0.0
    %754 = vmatprep.subr.mxu0 0.0
    %755 = vmatpush1.msra.mxu0 0.0
    %756 = vmatprep.subr.mxu0 0.0
    %757 = vmatpush1.msra.mxu0 0.0
    %758 = vmatprep.subr.mxu0 0.0
    %759 = vmatpush1.msra.mxu0 0.0
    %760 = vmatprep.subr.mxu0 0.0
    %761 = vmatpush1.msra.mxu0 0.0
    %762 = vmatprep.subr.mxu0 0.0
    %763 = vmatpush1.msra.mxu0 0.0
    %764 = vmatprep.subr.mxu0 0.0
    %765 = vmatpush1.msra.mxu0 0.0
    %766 = vmatprep.subr.mxu0 0.0
    %767 = vmatpush1.msra.mxu0 0.0
    %768 = vmatprep.subr.mxu0 0.0
    %769 = vmatpush1.msra.mxu0 0.0
    %770 = vmatprep.subr.mxu0 0.0
    %771 = vmatpush1.msra.mxu0 0.0
    %772 = vmatprep.subr.mxu0 0.0
    %773 = vmatpush1.msra.mxu0 0.0
    %774 = vmatprep.subr.mxu0 0.0
    %775 = vmatpush1.msra.mxu0 0.0
    %776 = vmatprep.subr.mxu0 0.0
    %777 = vmatpush1.msra.mxu0 0.0
    %778 = vmatprep.subr.mxu0 0.0
    %779 = vmatpush1.msra.mxu0 0.0
    %780 = vmatprep.subr.mxu0 0.0
    %781 = vmatpush1.msra.mxu0 0.0
    %782 = vmatprep.subr.mxu0 0.0
    %783 = vmatpush1.msra.mxu0 0.0
    %784 = vmatprep.mubr.f32.mxu0 0.0
    %785 = vmatmul.mubr.f32.gmra.mrb[0].mxu0 %v555
    %v786 = vpop.f32.mrb[0].mxu0
    %v787 = vadd.f32 %v718, %v786
    %v788 = vpop.f32.mrb[0].mxu0
    %789 = vdwg.mxu0
    %v790 = vadd.f32 %v694, %v787
    %v791 = vadd.f32 %v790, %v227
    %s792 = scalar_lea.vmem [#allocation6], 256
    %v793 = vld [vmem:[%s792] sm:$0xff]
    %v794 = vld [vmem:[%s792 + $0x8] sm:$0xff]
    %v795 = vld [vmem:[%s792 + $0x10] sm:$0xff]
    %v796 = vld [vmem:[%s792 + $0x18] sm:$0xff]
    %v797 = vld [vmem:[%s792 + $0x20] sm:$0xff]
    %v798 = vld [vmem:[%s792 + $0x28] sm:$0xff]
    %v799 = vld [vmem:[%s792 + $0x30] sm:$0xff]
    %v800 = vld [vmem:[%s792 + $0x38] sm:$0xff]
    %v801 = vld [vmem:[%s792 + $0x40] sm:$0xff]
    %v802 = vld [vmem:[%s792 + $0x48] sm:$0xff]
    %v803 = vld [vmem:[%s792 + $0x50] sm:$0xff]
    %v804 = vld [vmem:[%s792 + $0x58] sm:$0xff]
    %v805 = vld [vmem:[%s792 + $0x60] sm:$0xff]
    %v806 = vld [vmem:[%s792 + $0x68] sm:$0xff]
    %v807 = vld [vmem:[%s792 + $0x70] sm:$0xff]
    %v808 = vld [vmem:[%s792 + $0x78] sm:$0xff]
    %s809 = scalar_lea.vmem %s8, 4
    %v810 = vld [vmem:[%s809] sm:$0x1]
    %v812 = vlaneseq
    %v813 = vshrl.u32 %v812, 7
    %v814 = vsub.s32 0, %v813
    %v815 = vrot.slane %v810, %v814
    %817 = vmatprep.subr.mxu0 0.0
    %818 = vmatpush1.msra.mxu0 %v793
    %819 = vmatprep.subr.mxu0 0.0
    %820 = vmatpush1.msra.mxu0 %v794
    %821 = vmatprep.subr.mxu0 0.0
    %822 = vmatpush1.msra.mxu0 %v795
    %823 = vmatprep.subr.mxu0 0.0
    %824 = vmatpush1.msra.mxu0 %v796
    %825 = vmatprep.subr.mxu0 0.0
    %826 = vmatpush1.msra.mxu0 %v797
    %827 = vmatprep.subr.mxu0 0.0
    %828 = vmatpush1.msra.mxu0 %v798
    %829 = vmatprep.subr.mxu0 0.0
    %830 = vmatpush1.msra.mxu0 %v799
    %831 = vmatprep.subr.mxu0 0.0
    %832 = vmatpush1.msra.mxu0 %v800
    %833 = vmatprep.subr.mxu0 0.0
    %834 = vmatpush1.msra.mxu0 %v801
    %835 = vmatprep.subr.mxu0 0.0
    %836 = vmatpush1.msra.mxu0 %v802
    %837 = vmatprep.subr.mxu0 0.0
    %838 = vmatpush1.msra.mxu0 %v803
    %839 = vmatprep.subr.mxu0 0.0
    %840 = vmatpush1.msra.mxu0 %v804
    %841 = vmatprep.subr.mxu0 0.0
    %842 = vmatpush1.msra.mxu0 %v805
    %843 = vmatprep.subr.mxu0 0.0
    %844 = vmatpush1.msra.mxu0 %v806
    %845 = vmatprep.subr.mxu0 0.0
    %846 = vmatpush1.msra.mxu0 %v807
    %847 = vmatprep.subr.mxu0 0.0
    %848 = vmatpush1.msra.mxu0 %v808
    %849 = vmatprep.subr.mxu0 0.0
    %850 = vmatpush1.msra.mxu0 0.0
    %851 = vmatprep.subr.mxu0 0.0
    %852 = vmatpush1.msra.mxu0 0.0
    %853 = vmatprep.subr.mxu0 0.0
    %854 = vmatpush1.msra.mxu0 0.0
    %855 = vmatprep.subr.mxu0 0.0
    %856 = vmatpush1.msra.mxu0 0.0
    %857 = vmatprep.subr.mxu0 0.0
    %858 = vmatpush1.msra.mxu0 0.0
    %859 = vmatprep.subr.mxu0 0.0
    %860 = vmatpush1.msra.mxu0 0.0
    %861 = vmatprep.subr.mxu0 0.0
    %862 = vmatpush1.msra.mxu0 0.0
    %863 = vmatprep.subr.mxu0 0.0
    %864 = vmatpush1.msra.mxu0 0.0
    %865 = vmatprep.subr.mxu0 0.0
    %866 = vmatpush1.msra.mxu0 0.0
    %867 = vmatprep.subr.mxu0 0.0
    %868 = vmatpush1.msra.mxu0 0.0
    %869 = vmatprep.subr.mxu0 0.0
    %870 = vmatpush1.msra.mxu0 0.0
    %871 = vmatprep.subr.mxu0 0.0
    %872 = vmatpush1.msra.mxu0 0.0
    %873 = vmatprep.subr.mxu0 0.0
    %874 = vmatpush1.msra.mxu0 0.0
    %875 = vmatprep.subr.mxu0 0.0
    %876 = vmatpush1.msra.mxu0 0.0
    %877 = vmatprep.subr.mxu0 0.0
    %878 = vmatpush1.msra.mxu0 0.0
    %879 = vmatprep.subr.mxu0 0.0
    %880 = vmatpush1.msra.mxu0 0.0
    %881 = vmatprep.mubr.f32.mxu0 0.0
    %882 = vmatmul.mubr.f32.gmra.mrb[0].mxu0 %v791
    %v883 = vpop.f32.mrb[0].mxu0
    %v884 = vadd.f32 %v815, %v883
    %v885 = vpop.f32.mrb[0].mxu0
    %886 = vdwg.mxu0
    %vm887 = vcmp.lt.s32.totalorder %v654, 16
    %v888 = vsel %vm887, 1, 0
    %v889 = vcvt.s32.f32 %v888
    %890 = vadd.xlane.f32.xlu0 %v884
    %v891 = vpop.xlane.xlu0 %890
    %v892 = vmul.f32 %v891, 0.0625
    %v893 = vsub.f32 %v884, %v892
    %v894 = vmul.f32 %v893, %v889
    %v895 = vmul.f32 %v894, %v894
    %896 = vadd.xlane.f32.xlu0 %v895
    %v897 = vpop.xlane.xlu0 %896
    %v898 = vmul.f32 %v897, 0.0625
    %v899 = vadd.f32 %v898, 1e-05
    %v900 = vrsqrt.pop %v899
    %v901 = vmul.f32 %v894, %v900
    %s902 = scalar_lea.vmem %s8, 5
    %v903 = vld [vmem:[%s902] sm:$0x1]
    %v905 = vlaneseq
    %v906 = vshrl.u32 %v905, 7
    %v907 = vsub.s32 0, %v906
    %v908 = vrot.slane %v903, %v907
    %v910 = vmul.f32 %v901, %v908
    %s911 = scalar_lea.vmem %s8, 6
    %v912 = vld [vmem:[%s911] sm:$0x1]
    %v914 = vlaneseq
    %v915 = vshrl.u32 %v914, 7
    %v916 = vsub.s32 0, %v915
    %v917 = vrot.slane %v912, %v916
    %v919 = vadd.f32 %v910, %v917
    %v920 = vxor.u32 %v919, 2147483648
    %v921 = vmul.f32 %v920, 1.442695
    %v922 = vpow.pop %v921
    %v923 = vadd.f32 %v922, 1.0
    %v924 = vrcp.pop %v923
    %v925 = vmul.f32 1.0, %v924
    %v926 = vmul.f32 %v919, %v925
    %s927 = scalar_lea.vmem [#allocation6], 384
    %v928 = vld [vmem:[%s927] sm:$0xff]
    %v929 = vld [vmem:[%s927 + $0x8] sm:$0xff]
    %v930 = vld [vmem:[%s927 + $0x10] sm:$0xff]
    %v931 = vld [vmem:[%s927 + $0x18] sm:$0xff]
    %v932 = vld [vmem:[%s927 + $0x20] sm:$0xff]
    %v933 = vld [vmem:[%s927 + $0x28] sm:$0xff]
    %v934 = vld [vmem:[%s927 + $0x30] sm:$0xff]
    %v935 = vld [vmem:[%s927 + $0x38] sm:$0xff]
    %v936 = vld [vmem:[%s927 + $0x40] sm:$0xff]
    %v937 = vld [vmem:[%s927 + $0x48] sm:$0xff]
    %v938 = vld [vmem:[%s927 + $0x50] sm:$0xff]
    %v939 = vld [vmem:[%s927 + $0x58] sm:$0xff]
    %v940 = vld [vmem:[%s927 + $0x60] sm:$0xff]
    %v941 = vld [vmem:[%s927 + $0x68] sm:$0xff]
    %v942 = vld [vmem:[%s927 + $0x70] sm:$0xff]
    %v943 = vld [vmem:[%s927 + $0x78] sm:$0xff]
    %s944 = scalar_lea.vmem %s8, 7
    %v945 = vld [vmem:[%s944] sm:$0x1]
    %v947 = vlaneseq
    %v948 = vshrl.u32 %v947, 7
    %v949 = vsub.s32 0, %v948
    %v950 = vrot.slane %v945, %v949
    %952 = vmatprep.subr.mxu0 0.0
    %953 = vmatpush1.msra.mxu0 %v928
    %954 = vmatprep.subr.mxu0 0.0
    %955 = vmatpush1.msra.mxu0 %v929
    %956 = vmatprep.subr.mxu0 0.0
    %957 = vmatpush1.msra.mxu0 %v930
    %958 = vmatprep.subr.mxu0 0.0
    %959 = vmatpush1.msra.mxu0 %v931
    %960 = vmatprep.subr.mxu0 0.0
    %961 = vmatpush1.msra.mxu0 %v932
    %962 = vmatprep.subr.mxu0 0.0
    %963 = vmatpush1.msra.mxu0 %v933
    %964 = vmatprep.subr.mxu0 0.0
    %965 = vmatpush1.msra.mxu0 %v934
    %966 = vmatprep.subr.mxu0 0.0
    %967 = vmatpush1.msra.mxu0 %v935
    %968 = vmatprep.subr.mxu0 0.0
    %969 = vmatpush1.msra.mxu0 %v936
    %970 = vmatprep.subr.mxu0 0.0
    %971 = vmatpush1.msra.mxu0 %v937
    %972 = vmatprep.subr.mxu0 0.0
    %973 = vmatpush1.msra.mxu0 %v938
    %974 = vmatprep.subr.mxu0 0.0
    %975 = vmatpush1.msra.mxu0 %v939
    %976 = vmatprep.subr.mxu0 0.0
    %977 = vmatpush1.msra.mxu0 %v940
    %978 = vmatprep.subr.mxu0 0.0
    %979 = vmatpush1.msra.mxu0 %v941
    %980 = vmatprep.subr.mxu0 0.0
    %981 = vmatpush1.msra.mxu0 %v942
    %982 = vmatprep.subr.mxu0 0.0
    %983 = vmatpush1.msra.mxu0 %v943
    %984 = vmatprep.subr.mxu0 0.0
    %985 = vmatpush1.msra.mxu0 0.0
    %986 = vmatprep.subr.mxu0 0.0
    %987 = vmatpush1.msra.mxu0 0.0
    %988 = vmatprep.subr.mxu0 0.0
    %989 = vmatpush1.msra.mxu0 0.0
    %990 = vmatprep.subr.mxu0 0.0
    %991 = vmatpush1.msra.mxu0 0.0
    %992 = vmatprep.subr.mxu0 0.0
    %993 = vmatpush1.msra.mxu0 0.0
    %994 = vmatprep.subr.mxu0 0.0
    %995 = vmatpush1.msra.mxu0 0.0
    %996 = vmatprep.subr.mxu0 0.0
    %997 = vmatpush1.msra.mxu0 0.0
    %998 = vmatprep.subr.mxu0 0.0
    %999 = vmatpush1.msra.mxu0 0.0
    %1000 = vmatprep.subr.mxu0 0.0
    %1001 = vmatpush1.msra.mxu0 0.0
    %1002 = vmatprep.subr.mxu0 0.0
    %1003 = vmatpush1.msra.mxu0 0.0
    %1004 = vmatprep.subr.mxu0 0.0
    %1005 = vmatpush1.msra.mxu0 0.0
    %1006 = vmatprep.subr.mxu0 0.0
    %1007 = vmatpush1.msra.mxu0 0.0
    %1008 = vmatprep.subr.mxu0 0.0
    %1009 = vmatpush1.msra.mxu0 0.0
    %1010 = vmatprep.subr.mxu0 0.0
    %1011 = vmatpush1.msra.mxu0 0.0
    %1012 = vmatprep.subr.mxu0 0.0
    %1013 = vmatpush1.msra.mxu0 0.0
    %1014 = vmatprep.subr.mxu0 0.0
    %1015 = vmatpush1.msra.mxu0 0.0
    %1016 = vmatprep.mubr.f32.mxu0 0.0
    %1017 = vmatmul.mubr.f32.gmra.mrb[0].mxu0 %v556
    %v1018 = vpop.f32.mrb[0].mxu0
    %v1019 = vadd.f32 %v950, %v1018
    %v1020 = vpop.f32.mrb[0].mxu0
    %1021 = vdwg.mxu0
    %v1022 = vadd.f32 %v926, %v1019
    %v1023 = vadd.f32 %v1022, %v229
    %s1024 = scalar_lea.vmem [#allocation6], 512
    %v1025 = vld [vmem:[%s1024] sm:$0xff]
    %v1026 = vld [vmem:[%s1024 + $0x8] sm:$0xff]
    %v1027 = vld [vmem:[%s1024 + $0x10] sm:$0xff]
    %v1028 = vld [vmem:[%s1024 + $0x18] sm:$0xff]
    %v1029 = vld [vmem:[%s1024 + $0x20] sm:$0xff]
    %v1030 = vld [vmem:[%s1024 + $0x28] sm:$0xff]
    %v1031 = vld [vmem:[%s1024 + $0x30] sm:$0xff]
    %v1032 = vld [vmem:[%s1024 + $0x38] sm:$0xff]
    %v1033 = vld [vmem:[%s1024 + $0x40] sm:$0xff]
    %v1034 = vld [vmem:[%s1024 + $0x48] sm:$0xff]
    %v1035 = vld [vmem:[%s1024 + $0x50] sm:$0xff]
    %v1036 = vld [vmem:[%s1024 + $0x58] sm:$0xff]
    %v1037 = vld [vmem:[%s1024 + $0x60] sm:$0xff]
    %v1038 = vld [vmem:[%s1024 + $0x68] sm:$0xff]
    %v1039 = vld [vmem:[%s1024 + $0x70] sm:$0xff]
    %v1040 = vld [vmem:[%s1024 + $0x78] sm:$0xff]
    %s1041 = scalar_lea.vmem %s8, 8
    %v1042 = vld [vmem:[%s1041] sm:$0x1]
    %v1044 = vlaneseq
    %v1045 = vshrl.u32 %v1044, 7
    %v1046 = vsub.s32 0, %v1045
    %v1047 = vrot.slane %v1042, %v1046
    %1049 = vmatprep.subr.mxu0 0.0
    %1050 = vmatpush1.msra.mxu0 %v1025
    %1051 = vmatprep.subr.mxu0 0.0
    %1052 = vmatpush1.msra.mxu0 %v1026
    %1053 = vmatprep.subr.mxu0 0.0
    %1054 = vmatpush1.msra.mxu0 %v1027
    %1055 = vmatprep.subr.mxu0 0.0
    %1056 = vmatpush1.msra.mxu0 %v1028
    %1057 = vmatprep.subr.mxu0 0.0
    %1058 = vmatpush1.msra.mxu0 %v1029
    %1059 = vmatprep.subr.mxu0 0.0
    %1060 = vmatpush1.msra.mxu0 %v1030
    %1061 = vmatprep.subr.mxu0 0.0
    %1062 = vmatpush1.msra.mxu0 %v1031
    %1063 = vmatprep.subr.mxu0 0.0
    %1064 = vmatpush1.msra.mxu0 %v1032
    %1065 = vmatprep.subr.mxu0 0.0
    %1066 = vmatpush1.msra.mxu0 %v1033
    %1067 = vmatprep.subr.mxu0 0.0
    %1068 = vmatpush1.msra.mxu0 %v1034
    %1069 = vmatprep.subr.mxu0 0.0
    %1070 = vmatpush1.msra.mxu0 %v1035
    %1071 = vmatprep.subr.mxu0 0.0
    %1072 = vmatpush1.msra.mxu0 %v1036
    %1073 = vmatprep.subr.mxu0 0.0
    %1074 = vmatpush1.msra.mxu0 %v1037
    %1075 = vmatprep.subr.mxu0 0.0
    %1076 = vmatpush1.msra.mxu0 %v1038
    %1077 = vmatprep.subr.mxu0 0.0
    %1078 = vmatpush1.msra.mxu0 %v1039
    %1079 = vmatprep.subr.mxu0 0.0
    %1080 = vmatpush1.msra.mxu0 %v1040
    %1081 = vmatprep.subr.mxu0 0.0
    %1082 = vmatpush1.msra.mxu0 0.0
    %1083 = vmatprep.subr.mxu0 0.0
    %1084 = vmatpush1.msra.mxu0 0.0
    %1085 = vmatprep.subr.mxu0 0.0
    %1086 = vmatpush1.msra.mxu0 0.0
    %1087 = vmatprep.subr.mxu0 0.0
    %1088 = vmatpush1.msra.mxu0 0.0
    %1089 = vmatprep.subr.mxu0 0.0
    %1090 = vmatpush1.msra.mxu0 0.0
    %1091 = vmatprep.subr.mxu0 0.0
    %1092 = vmatpush1.msra.mxu0 0.0
    %1093 = vmatprep.subr.mxu0 0.0
    %1094 = vmatpush1.msra.mxu0 0.0
    %1095 = vmatprep.subr.mxu0 0.0
    %1096 = vmatpush1.msra.mxu0 0.0
    %1097 = vmatprep.subr.mxu0 0.0
    %1098 = vmatpush1.msra.mxu0 0.0
    %1099 = vmatprep.subr.mxu0 0.0
    %1100 = vmatpush1.msra.mxu0 0.0
    %1101 = vmatprep.subr.mxu0 0.0
    %1102 = vmatpush1.msra.mxu0 0.0
    %1103 = vmatprep.subr.mxu0 0.0
    %1104 = vmatpush1.msra.mxu0 0.0
    %1105 = vmatprep.subr.mxu0 0.0
    %1106 = vmatpush1.msra.mxu0 0.0
    %1107 = vmatprep.subr.mxu0 0.0
    %1108 = vmatpush1.msra.mxu0 0.0
    %1109 = vmatprep.subr.mxu0 0.0
    %1110 = vmatpush1.msra.mxu0 0.0
    %1111 = vmatprep.subr.mxu0 0.0
    %1112 = vmatpush1.msra.mxu0 0.0
    %1113 = vmatprep.mubr.f32.mxu0 0.0
    %1114 = vmatmul.mubr.f32.gmra.mrb[0].mxu0 %v1023
    %v1115 = vpop.f32.mrb[0].mxu0
    %v1116 = vadd.f32 %v1047, %v1115
    %v1117 = vpop.f32.mrb[0].mxu0
    %1118 = vdwg.mxu0
    %vm1119 = vcmp.lt.s32.totalorder %v654, 8
    %v1120 = vsel %vm1119, 1, 0
    %v1121 = vcvt.s32.f32 %v1120
    %1122 = vadd.xlane.f32.xlu0 %v1116
    %v1123 = vpop.xlane.xlu0 %1122
    %v1124 = vmul.f32 %v1123, 0.125
    %v1125 = vsub.f32 %v1116, %v1124
    %v1126 = vmul.f32 %v1125, %v1121
    %v1127 = vmul.f32 %v1126, %v1126
    %1128 = vadd.xlane.f32.xlu0 %v1127
    %v1129 = vpop.xlane.xlu0 %1128
    %v1130 = vmul.f32 %v1129, 0.125
    %v1131 = vadd.f32 %v1130, 1e-05
    %v1132 = vrsqrt.pop %v1131
    %v1133 = vmul.f32 %v1126, %v1132
    %s1134 = scalar_lea.vmem %s8, 9
    %v1135 = vld [vmem:[%s1134] sm:$0x1]
    %v1137 = vlaneseq
    %v1138 = vshrl.u32 %v1137, 7
    %v1139 = vsub.s32 0, %v1138
    %v1140 = vrot.slane %v1135, %v1139
    %v1142 = vmul.f32 %v1133, %v1140
    %s1143 = scalar_lea.vmem %s8, 10
    %v1144 = vld [vmem:[%s1143] sm:$0x1]
    %v1146 = vlaneseq
    %v1147 = vshrl.u32 %v1146, 7
    %v1148 = vsub.s32 0, %v1147
    %v1149 = vrot.slane %v1144, %v1148
    %v1151 = vadd.f32 %v1142, %v1149
    %v1152 = vxor.u32 %v1151, 2147483648
    %v1153 = vmul.f32 %v1152, 1.442695
    %v1154 = vpow.pop %v1153
    %v1155 = vadd.f32 %v1154, 1.0
    %v1156 = vrcp.pop %v1155
    %v1157 = vmul.f32 1.0, %v1156
    %v1158 = vmul.f32 %v1151, %v1157
    %s1159 = scalar_lea.vmem [#allocation6], 640
    %v1160 = vld [vmem:[%s1159] sm:$0xff]
    %v1161 = vld [vmem:[%s1159 + $0x8] sm:$0xff]
    %v1162 = vld [vmem:[%s1159 + $0x10] sm:$0xff]
    %v1163 = vld [vmem:[%s1159 + $0x18] sm:$0xff]
    %v1164 = vld [vmem:[%s1159 + $0x20] sm:$0xff]
    %v1165 = vld [vmem:[%s1159 + $0x28] sm:$0xff]
    %v1166 = vld [vmem:[%s1159 + $0x30] sm:$0xff]
    %v1167 = vld [vmem:[%s1159 + $0x38] sm:$0xff]
    %v1168 = vld [vmem:[%s1159 + $0x40] sm:$0xff]
    %v1169 = vld [vmem:[%s1159 + $0x48] sm:$0xff]
    %v1170 = vld [vmem:[%s1159 + $0x50] sm:$0xff]
    %v1171 = vld [vmem:[%s1159 + $0x58] sm:$0xff]
    %v1172 = vld [vmem:[%s1159 + $0x60] sm:$0xff]
    %v1173 = vld [vmem:[%s1159 + $0x68] sm:$0xff]
    %v1174 = vld [vmem:[%s1159 + $0x70] sm:$0xff]
    %v1175 = vld [vmem:[%s1159 + $0x78] sm:$0xff]
    %s1176 = scalar_lea.vmem %s8, 11
    %v1177 = vld [vmem:[%s1176] sm:$0x1]
    %v1179 = vlaneseq
    %v1180 = vshrl.u32 %v1179, 7
    %v1181 = vsub.s32 0, %v1180
    %v1182 = vrot.slane %v1177, %v1181
    %1184 = vmatprep.subr.mxu0 0.0
    %1185 = vmatpush1.msra.mxu0 %v1160
    %1186 = vmatprep.subr.mxu0 0.0
    %1187 = vmatpush1.msra.mxu0 %v1161
    %1188 = vmatprep.subr.mxu0 0.0
    %1189 = vmatpush1.msra.mxu0 %v1162
    %1190 = vmatprep.subr.mxu0 0.0
    %1191 = vmatpush1.msra.mxu0 %v1163
    %1192 = vmatprep.subr.mxu0 0.0
    %1193 = vmatpush1.msra.mxu0 %v1164
    %1194 = vmatprep.subr.mxu0 0.0
    %1195 = vmatpush1.msra.mxu0 %v1165
    %1196 = vmatprep.subr.mxu0 0.0
    %1197 = vmatpush1.msra.mxu0 %v1166
    %1198 = vmatprep.subr.mxu0 0.0
    %1199 = vmatpush1.msra.mxu0 %v1167
    %1200 = vmatprep.subr.mxu0 0.0
    %1201 = vmatpush1.msra.mxu0 %v1168
    %1202 = vmatprep.subr.mxu0 0.0
    %1203 = vmatpush1.msra.mxu0 %v1169
    %1204 = vmatprep.subr.mxu0 0.0
    %1205 = vmatpush1.msra.mxu0 %v1170
    %1206 = vmatprep.subr.mxu0 0.0
    %1207 = vmatpush1.msra.mxu0 %v1171
    %1208 = vmatprep.subr.mxu0 0.0
    %1209 = vmatpush1.msra.mxu0 %v1172
    %1210 = vmatprep.subr.mxu0 0.0
    %1211 = vmatpush1.msra.mxu0 %v1173
    %1212 = vmatprep.subr.mxu0 0.0
    %1213 = vmatpush1.msra.mxu0 %v1174
    %1214 = vmatprep.subr.mxu0 0.0
    %1215 = vmatpush1.msra.mxu0 %v1175
    %1216 = vmatprep.subr.mxu0 0.0
    %1217 = vmatpush1.msra.mxu0 0.0
    %1218 = vmatprep.subr.mxu0 0.0
    %1219 = vmatpush1.msra.mxu0 0.0
    %1220 = vmatprep.subr.mxu0 0.0
    %1221 = vmatpush1.msra.mxu0 0.0
    %1222 = vmatprep.subr.mxu0 0.0
    %1223 = vmatpush1.msra.mxu0 0.0
    %1224 = vmatprep.subr.mxu0 0.0
    %1225 = vmatpush1.msra.mxu0 0.0
    %1226 = vmatprep.subr.mxu0 0.0
    %1227 = vmatpush1.msra.mxu0 0.0
    %1228 = vmatprep.subr.mxu0 0.0
    %1229 = vmatpush1.msra.mxu0 0.0
    %1230 = vmatprep.subr.mxu0 0.0
    %1231 = vmatpush1.msra.mxu0 0.0
    %1232 = vmatprep.subr.mxu0 0.0
    %1233 = vmatpush1.msra.mxu0 0.0
    %1234 = vmatprep.subr.mxu0 0.0
    %1235 = vmatpush1.msra.mxu0 0.0
    %1236 = vmatprep.subr.mxu0 0.0
    %1237 = vmatpush1.msra.mxu0 0.0
    %1238 = vmatprep.subr.mxu0 0.0
    %1239 = vmatpush1.msra.mxu0 0.0
    %1240 = vmatprep.subr.mxu0 0.0
    %1241 = vmatpush1.msra.mxu0 0.0
    %1242 = vmatprep.subr.mxu0 0.0
    %1243 = vmatpush1.msra.mxu0 0.0
    %1244 = vmatprep.subr.mxu0 0.0
    %1245 = vmatpush1.msra.mxu0 0.0
    %1246 = vmatprep.subr.mxu0 0.0
    %1247 = vmatpush1.msra.mxu0 0.0
    %1248 = vmatprep.mubr.f32.mxu0 0.0
    %1249 = vmatmul.mubr.f32.gmra.mrb[0].mxu0 %v557
    %v1250 = vpop.f32.mrb[0].mxu0
    %v1251 = vadd.f32 %v1182, %v1250
    %v1252 = vpop.f32.mrb[0].mxu0
    %1253 = vdwg.mxu0
    %v1254 = vadd.f32 %v1158, %v1251
    %v1255 = vadd.f32 %v1254, %v298
    %s1256 = scalar_lea.vmem [#allocation6], 768
    %v1257 = vld [vmem:[%s1256] sm:$0xff]
    %v1258 = vld [vmem:[%s1256 + $0x8] sm:$0xff]
    %v1259 = vld [vmem:[%s1256 + $0x10] sm:$0xff]
    %v1260 = vld [vmem:[%s1256 + $0x18] sm:$0xff]
    %v1261 = vld [vmem:[%s1256 + $0x20] sm:$0xff]
    %v1262 = vld [vmem:[%s1256 + $0x28] sm:$0xff]
    %v1263 = vld [vmem:[%s1256 + $0x30] sm:$0xff]
    %v1264 = vld [vmem:[%s1256 + $0x38] sm:$0xff]
    %v1265 = vld [vmem:[%s1256 + $0x40] sm:$0xff]
    %v1266 = vld [vmem:[%s1256 + $0x48] sm:$0xff]
    %v1267 = vld [vmem:[%s1256 + $0x50] sm:$0xff]
    %v1268 = vld [vmem:[%s1256 + $0x58] sm:$0xff]
    %v1269 = vld [vmem:[%s1256 + $0x60] sm:$0xff]
    %v1270 = vld [vmem:[%s1256 + $0x68] sm:$0xff]
    %v1271 = vld [vmem:[%s1256 + $0x70] sm:$0xff]
    %v1272 = vld [vmem:[%s1256 + $0x78] sm:$0xff]
    %s1273 = scalar_lea.vmem %s8, 12
    %v1274 = vld [vmem:[%s1273] sm:$0x1]
    %v1276 = vlaneseq
    %v1277 = vshrl.u32 %v1276, 7
    %v1278 = vsub.s32 0, %v1277
    %v1279 = vrot.slane %v1274, %v1278
    %1281 = vmatprep.subr.mxu0 0.0
    %1282 = vmatpush1.msra.mxu0 %v1257
    %1283 = vmatprep.subr.mxu0 0.0
    %1284 = vmatpush1.msra.mxu0 %v1258
    %1285 = vmatprep.subr.mxu0 0.0
    %1286 = vmatpush1.msra.mxu0 %v1259
    %1287 = vmatprep.subr.mxu0 0.0
    %1288 = vmatpush1.msra.mxu0 %v1260
    %1289 = vmatprep.subr.mxu0 0.0
    %1290 = vmatpush1.msra.mxu0 %v1261
    %1291 = vmatprep.subr.mxu0 0.0
    %1292 = vmatpush1.msra.mxu0 %v1262
    %1293 = vmatprep.subr.mxu0 0.0
    %1294 = vmatpush1.msra.mxu0 %v1263
    %1295 = vmatprep.subr.mxu0 0.0
    %1296 = vmatpush1.msra.mxu0 %v1264
    %1297 = vmatprep.subr.mxu0 0.0
    %1298 = vmatpush1.msra.mxu0 %v1265
    %1299 = vmatprep.subr.mxu0 0.0
    %1300 = vmatpush1.msra.mxu0 %v1266
    %1301 = vmatprep.subr.mxu0 0.0
    %1302 = vmatpush1.msra.mxu0 %v1267
    %1303 = vmatprep.subr.mxu0 0.0
    %1304 = vmatpush1.msra.mxu0 %v1268
    %1305 = vmatprep.subr.mxu0 0.0
    %1306 = vmatpush1.msra.mxu0 %v1269
    %1307 = vmatprep.subr.mxu0 0.0
    %1308 = vmatpush1.msra.mxu0 %v1270
    %1309 = vmatprep.subr.mxu0 0.0
    %1310 = vmatpush1.msra.mxu0 %v1271
    %1311 = vmatprep.subr.mxu0 0.0
    %1312 = vmatpush1.msra.mxu0 %v1272
    %1313 = vmatprep.subr.mxu0 0.0
    %1314 = vmatpush1.msra.mxu0 0.0
    %1315 = vmatprep.subr.mxu0 0.0
    %1316 = vmatpush1.msra.mxu0 0.0
    %1317 = vmatprep.subr.mxu0 0.0
    %1318 = vmatpush1.msra.mxu0 0.0
    %1319 = vmatprep.subr.mxu0 0.0
    %1320 = vmatpush1.msra.mxu0 0.0
    %1321 = vmatprep.subr.mxu0 0.0
    %1322 = vmatpush1.msra.mxu0 0.0
    %1323 = vmatprep.subr.mxu0 0.0
    %1324 = vmatpush1.msra.mxu0 0.0
    %1325 = vmatprep.subr.mxu0 0.0
    %1326 = vmatpush1.msra.mxu0 0.0
    %1327 = vmatprep.subr.mxu0 0.0
    %1328 = vmatpush1.msra.mxu0 0.0
    %1329 = vmatprep.subr.mxu0 0.0
    %1330 = vmatpush1.msra.mxu0 0.0
    %1331 = vmatprep.subr.mxu0 0.0
    %1332 = vmatpush1.msra.mxu0 0.0
    %1333 = vmatprep.subr.mxu0 0.0
    %1334 = vmatpush1.msra.mxu0 0.0
    %1335 = vmatprep.subr.mxu0 0.0
    %1336 = vmatpush1.msra.mxu0 0.0
    %1337 = vmatprep.subr.mxu0 0.0
    %1338 = vmatpush1.msra.mxu0 0.0
    %1339 = vmatprep.subr.mxu0 0.0
    %1340 = vmatpush1.msra.mxu0 0.0
    %1341 = vmatprep.subr.mxu0 0.0
    %1342 = vmatpush1.msra.mxu0 0.0
    %1343 = vmatprep.subr.mxu0 0.0
    %1344 = vmatpush1.msra.mxu0 0.0
    %1345 = vmatprep.mubr.f32.mxu0 0.0
    %1346 = vmatmul.mubr.f32.gmra.mrb[0].mxu0 %v1255
    %v1347 = vpop.f32.mrb[0].mxu0
    %v1348 = vadd.f32 %v1279, %v1347
    %v1349 = vpop.f32.mrb[0].mxu0
    %1350 = vdwg.mxu0
    %1351 = vadd.xlane.f32.xlu0 %v1348
    %v1352 = vpop.xlane.xlu0 %1351
    %v1353 = vmul.f32 %v1352, 0.0625
    %v1354 = vsub.f32 %v1348, %v1353
    %v1355 = vmul.f32 %v1354, %v889
    %v1356 = vmul.f32 %v1355, %v1355
    %1357 = vadd.xlane.f32.xlu0 %v1356
    %v1358 = vpop.xlane.xlu0 %1357
    %v1359 = vmul.f32 %v1358, 0.0625
    %v1360 = vadd.f32 %v1359, 1e-05
    %v1361 = vrsqrt.pop %v1360
    %v1362 = vmul.f32 %v1355, %v1361
    %s1363 = scalar_lea.vmem %s8, 13
    %v1364 = vld [vmem:[%s1363] sm:$0x1]
    %v1366 = vlaneseq
    %v1367 = vshrl.u32 %v1366, 7
    %v1368 = vsub.s32 0, %v1367
    %v1369 = vrot.slane %v1364, %v1368
    %v1371 = vmul.f32 %v1362, %v1369
    %s1372 = scalar_lea.vmem %s8, 14
    %v1373 = vld [vmem:[%s1372] sm:$0x1]
    %v1375 = vlaneseq
    %v1376 = vshrl.u32 %v1375, 7
    %v1377 = vsub.s32 0, %v1376
    %v1378 = vrot.slane %v1373, %v1377
    %v1380 = vadd.f32 %v1371, %v1378
    %v1381 = vxor.u32 %v1380, 2147483648
    %v1382 = vmul.f32 %v1381, 1.442695
    %v1383 = vpow.pop %v1382
    %v1384 = vadd.f32 %v1383, 1.0
    %v1385 = vrcp.pop %v1384
    %v1386 = vmul.f32 1.0, %v1385
    %v1387 = vmul.f32 %v1380, %v1386
    %v1388 = vadd.f32 %v1387, %v926
    %s1389 = scalar_lea.vmem [#allocation6], 896
    %v1390 = vld [vmem:[%s1389] sm:$0xff]
    %v1391 = vld [vmem:[%s1389 + $0x8] sm:$0xff]
    %v1392 = vld [vmem:[%s1389 + $0x10] sm:$0xff]
    %v1393 = vld [vmem:[%s1389 + $0x18] sm:$0xff]
    %v1394 = vld [vmem:[%s1389 + $0x20] sm:$0xff]
    %v1395 = vld [vmem:[%s1389 + $0x28] sm:$0xff]
    %v1396 = vld [vmem:[%s1389 + $0x30] sm:$0xff]
    %v1397 = vld [vmem:[%s1389 + $0x38] sm:$0xff]
    %v1398 = vld [vmem:[%s1389 + $0x40] sm:$0xff]
    %v1399 = vld [vmem:[%s1389 + $0x48] sm:$0xff]
    %v1400 = vld [vmem:[%s1389 + $0x50] sm:$0xff]
    %v1401 = vld [vmem:[%s1389 + $0x58] sm:$0xff]
    %v1402 = vld [vmem:[%s1389 + $0x60] sm:$0xff]
    %v1403 = vld [vmem:[%s1389 + $0x68] sm:$0xff]
    %v1404 = vld [vmem:[%s1389 + $0x70] sm:$0xff]
    %v1405 = vld [vmem:[%s1389 + $0x78] sm:$0xff]
    %s1406 = scalar_lea.vmem %s8, 15
    %v1407 = vld [vmem:[%s1406] sm:$0x1]
    %v1409 = vlaneseq
    %v1410 = vshrl.u32 %v1409, 7
    %v1411 = vsub.s32 0, %v1410
    %v1412 = vrot.slane %v1407, %v1411
    %1414 = vmatprep.subr.mxu0 0.0
    %1415 = vmatpush1.msra.mxu0 %v1390
    %1416 = vmatprep.subr.mxu0 0.0
    %1417 = vmatpush1.msra.mxu0 %v1391
    %1418 = vmatprep.subr.mxu0 0.0
    %1419 = vmatpush1.msra.mxu0 %v1392
    %1420 = vmatprep.subr.mxu0 0.0
    %1421 = vmatpush1.msra.mxu0 %v1393
    %1422 = vmatprep.subr.mxu0 0.0
    %1423 = vmatpush1.msra.mxu0 %v1394
    %1424 = vmatprep.subr.mxu0 0.0
    %1425 = vmatpush1.msra.mxu0 %v1395
    %1426 = vmatprep.subr.mxu0 0.0
    %1427 = vmatpush1.msra.mxu0 %v1396
    %1428 = vmatprep.subr.mxu0 0.0
    %1429 = vmatpush1.msra.mxu0 %v1397
    %1430 = vmatprep.subr.mxu0 0.0
    %1431 = vmatpush1.msra.mxu0 %v1398
    %1432 = vmatprep.subr.mxu0 0.0
    %1433 = vmatpush1.msra.mxu0 %v1399
    %1434 = vmatprep.subr.mxu0 0.0
    %1435 = vmatpush1.msra.mxu0 %v1400
    %1436 = vmatprep.subr.mxu0 0.0
    %1437 = vmatpush1.msra.mxu0 %v1401
    %1438 = vmatprep.subr.mxu0 0.0
    %1439 = vmatpush1.msra.mxu0 %v1402
    %1440 = vmatprep.subr.mxu0 0.0
    %1441 = vmatpush1.msra.mxu0 %v1403
    %1442 = vmatprep.subr.mxu0 0.0
    %1443 = vmatpush1.msra.mxu0 %v1404
    %1444 = vmatprep.subr.mxu0 0.0
    %1445 = vmatpush1.msra.mxu0 %v1405
    %1446 = vmatprep.subr.mxu0 0.0
    %1447 = vmatpush1.msra.mxu0 0.0
    %1448 = vmatprep.subr.mxu0 0.0
    %1449 = vmatpush1.msra.mxu0 0.0
    %1450 = vmatprep.subr.mxu0 0.0
    %1451 = vmatpush1.msra.mxu0 0.0
    %1452 = vmatprep.subr.mxu0 0.0
    %1453 = vmatpush1.msra.mxu0 0.0
    %1454 = vmatprep.subr.mxu0 0.0
    %1455 = vmatpush1.msra.mxu0 0.0
    %1456 = vmatprep.subr.mxu0 0.0
    %1457 = vmatpush1.msra.mxu0 0.0
    %1458 = vmatprep.subr.mxu0 0.0
    %1459 = vmatpush1.msra.mxu0 0.0
    %1460 = vmatprep.subr.mxu0 0.0
    %1461 = vmatpush1.msra.mxu0 0.0
    %1462 = vmatprep.subr.mxu0 0.0
    %1463 = vmatpush1.msra.mxu0 0.0
    %1464 = vmatprep.subr.mxu0 0.0
    %1465 = vmatpush1.msra.mxu0 0.0
    %1466 = vmatprep.subr.mxu0 0.0
    %1467 = vmatpush1.msra.mxu0 0.0
    %1468 = vmatprep.subr.mxu0 0.0
    %1469 = vmatpush1.msra.mxu0 0.0
    %1470 = vmatprep.subr.mxu0 0.0
    %1471 = vmatpush1.msra.mxu0 0.0
    %1472 = vmatprep.subr.mxu0 0.0
    %1473 = vmatpush1.msra.mxu0 0.0
    %1474 = vmatprep.subr.mxu0 0.0
    %1475 = vmatpush1.msra.mxu0 0.0
    %1476 = vmatprep.subr.mxu0 0.0
    %1477 = vmatpush1.msra.mxu0 0.0
    %1478 = vmatprep.mubr.f32.mxu0 0.0
    %1479 = vmatmul.mubr.f32.gmra.mrb[0].mxu0 %v558
    %v1480 = vpop.f32.mrb[0].mxu0
    %v1481 = vadd.f32 %v1412, %v1480
    %v1482 = vpop.f32.mrb[0].mxu0
    %1483 = vdwg.mxu0
    %v1484 = vadd.f32 %v1388, %v1481
    %v1485 = vadd.f32 %v1484, %v300
    %s1486 = scalar_lea.vmem [#allocation6], 1024
    %v1487 = vld [vmem:[%s1486] sm:$0xff]
    %v1488 = vld [vmem:[%s1486 + $0x8] sm:$0xff]
    %v1489 = vld [vmem:[%s1486 + $0x10] sm:$0xff]
    %v1490 = vld [vmem:[%s1486 + $0x18] sm:$0xff]
    %v1491 = vld [vmem:[%s1486 + $0x20] sm:$0xff]
    %v1492 = vld [vmem:[%s1486 + $0x28] sm:$0xff]
    %v1493 = vld [vmem:[%s1486 + $0x30] sm:$0xff]
    %v1494 = vld [vmem:[%s1486 + $0x38] sm:$0xff]
    %v1495 = vld [vmem:[%s1486 + $0x40] sm:$0xff]
    %v1496 = vld [vmem:[%s1486 + $0x48] sm:$0xff]
    %v1497 = vld [vmem:[%s1486 + $0x50] sm:$0xff]
    %v1498 = vld [vmem:[%s1486 + $0x58] sm:$0xff]
    %v1499 = vld [vmem:[%s1486 + $0x60] sm:$0xff]
    %v1500 = vld [vmem:[%s1486 + $0x68] sm:$0xff]
    %v1501 = vld [vmem:[%s1486 + $0x70] sm:$0xff]
    %v1502 = vld [vmem:[%s1486 + $0x78] sm:$0xff]
    %s1503 = scalar_lea.vmem %s8, 16
    %v1504 = vld [vmem:[%s1503] sm:$0x1]
    %v1506 = vlaneseq
    %v1507 = vshrl.u32 %v1506, 7
    %v1508 = vsub.s32 0, %v1507
    %v1509 = vrot.slane %v1504, %v1508
    %1511 = vmatprep.subr.mxu0 0.0
    %1512 = vmatpush1.msra.mxu0 %v1487
    %1513 = vmatprep.subr.mxu0 0.0
    %1514 = vmatpush1.msra.mxu0 %v1488
    %1515 = vmatprep.subr.mxu0 0.0
    %1516 = vmatpush1.msra.mxu0 %v1489
    %1517 = vmatprep.subr.mxu0 0.0
    %1518 = vmatpush1.msra.mxu0 %v1490
    %1519 = vmatprep.subr.mxu0 0.0
    %1520 = vmatpush1.msra.mxu0 %v1491
    %1521 = vmatprep.subr.mxu0 0.0
    %1522 = vmatpush1.msra.mxu0 %v1492
    %1523 = vmatprep.subr.mxu0 0.0
    %1524 = vmatpush1.msra.mxu0 %v1493
    %1525 = vmatprep.subr.mxu0 0.0
    %1526 = vmatpush1.msra.mxu0 %v1494
    %1527 = vmatprep.subr.mxu0 0.0
    %1528 = vmatpush1.msra.mxu0 %v1495
    %1529 = vmatprep.subr.mxu0 0.0
    %1530 = vmatpush1.msra.mxu0 %v1496
    %1531 = vmatprep.subr.mxu0 0.0
    %1532 = vmatpush1.msra.mxu0 %v1497
    %1533 = vmatprep.subr.mxu0 0.0
    %1534 = vmatpush1.msra.mxu0 %v1498
    %1535 = vmatprep.subr.mxu0 0.0
    %1536 = vmatpush1.msra.mxu0 %v1499
    %1537 = vmatprep.subr.mxu0 0.0
    %1538 = vmatpush1.msra.mxu0 %v1500
    %1539 = vmatprep.subr.mxu0 0.0
    %1540 = vmatpush1.msra.mxu0 %v1501
    %1541 = vmatprep.subr.mxu0 0.0
    %1542 = vmatpush1.msra.mxu0 %v1502
    %1543 = vmatprep.subr.mxu0 0.0
    %1544 = vmatpush1.msra.mxu0 0.0
    %1545 = vmatprep.subr.mxu0 0.0
    %1546 = vmatpush1.msra.mxu0 0.0
    %1547 = vmatprep.subr.mxu0 0.0
    %1548 = vmatpush1.msra.mxu0 0.0
    %1549 = vmatprep.subr.mxu0 0.0
    %1550 = vmatpush1.msra.mxu0 0.0
    %1551 = vmatprep.subr.mxu0 0.0
    %1552 = vmatpush1.msra.mxu0 0.0
    %1553 = vmatprep.subr.mxu0 0.0
    %1554 = vmatpush1.msra.mxu0 0.0
    %1555 = vmatprep.subr.mxu0 0.0
    %1556 = vmatpush1.msra.mxu0 0.0
    %1557 = vmatprep.subr.mxu0 0.0
    %1558 = vmatpush1.msra.mxu0 0.0
    %1559 = vmatprep.subr.mxu0 0.0
    %1560 = vmatpush1.msra.mxu0 0.0
    %1561 = vmatprep.subr.mxu0 0.0
    %1562 = vmatpush1.msra.mxu0 0.0
    %1563 = vmatprep.subr.mxu0 0.0
    %1564 = vmatpush1.msra.mxu0 0.0
    %1565 = vmatprep.subr.mxu0 0.0
    %1566 = vmatpush1.msra.mxu0 0.0
    %1567 = vmatprep.subr.mxu0 0.0
    %1568 = vmatpush1.msra.mxu0 0.0
    %1569 = vmatprep.subr.mxu0 0.0
    %1570 = vmatpush1.msra.mxu0 0.0
    %1571 = vmatprep.subr.mxu0 0.0
    %1572 = vmatpush1.msra.mxu0 0.0
    %1573 = vmatprep.subr.mxu0 0.0
    %1574 = vmatpush1.msra.mxu0 0.0
    %1575 = vmatprep.mubr.f32.mxu0 0.0
    %1576 = vmatmul.mubr.f32.gmra.mrb[0].mxu0 %v1485
    %v1577 = vpop.f32.mrb[0].mxu0
    %v1578 = vadd.f32 %v1509, %v1577
    %v1579 = vpop.f32.mrb[0].mxu0
    %1580 = vdwg.mxu0
    %1581 = vadd.xlane.f32.xlu0 %v1578
    %v1582 = vpop.xlane.xlu0 %1581
    %v1583 = vmul.f32 %v1582, 0.03125
    %v1584 = vsub.f32 %v1578, %v1583
    %v1585 = vmul.f32 %v1584, %v657
    %v1586 = vmul.f32 %v1585, %v1585
    %1587 = vadd.xlane.f32.xlu0 %v1586
    %v1588 = vpop.xlane.xlu0 %1587
    %v1589 = vmul.f32 %v1588, 0.03125
    %v1590 = vadd.f32 %v1589, 1e-05
    %v1591 = vrsqrt.pop %v1590
    %v1592 = vmul.f32 %v1585, %v1591
    %s1593 = scalar_lea.vmem %s8, 17
    %v1594 = vld [vmem:[%s1593] sm:$0x1]
    %v1596 = vlaneseq
    %v1597 = vshrl.u32 %v1596, 7
    %v1598 = vsub.s32 0, %v1597
    %v1599 = vrot.slane %v1594, %v1598
    %v1601 = vmul.f32 %v1592, %v1599
    %s1602 = scalar_lea.vmem %s8, 18
    %v1603 = vld [vmem:[%s1602] sm:$0x1]
    %v1605 = vlaneseq
    %v1606 = vshrl.u32 %v1605, 7
    %v1607 = vsub.s32 0, %v1606
    %v1608 = vrot.slane %v1603, %v1607
    %v1610 = vadd.f32 %v1601, %v1608
    %v1611 = vxor.u32 %v1610, 2147483648
    %v1612 = vmul.f32 %v1611, 1.442695
    %v1613 = vpow.pop %v1612
    %v1614 = vadd.f32 %v1613, 1.0
    %v1615 = vrcp.pop %v1614
    %v1616 = vmul.f32 1.0, %v1615
    %v1617 = vmul.f32 %v1610, %v1616
    %v1618 = vadd.f32 %v1617, %v694
    %s1619 = scalar_lea.vmem [#allocation6], 1152
    %v1620 = vld [vmem:[%s1619] sm:$0xff]
    %v1621 = vld [vmem:[%s1619 + $0x8] sm:$0xff]
    %v1622 = vld [vmem:[%s1619 + $0x10] sm:$0xff]
    %v1623 = vld [vmem:[%s1619 + $0x18] sm:$0xff]
    %v1624 = vld [vmem:[%s1619 + $0x20] sm:$0xff]
    %v1625 = vld [vmem:[%s1619 + $0x28] sm:$0xff]
    %v1626 = vld [vmem:[%s1619 + $0x30] sm:$0xff]
    %v1627 = vld [vmem:[%s1619 + $0x38] sm:$0xff]
    %v1628 = vld [vmem:[%s1619 + $0x40] sm:$0xff]
    %v1629 = vld [vmem:[%s1619 + $0x48] sm:$0xff]
    %v1630 = vld [vmem:[%s1619 + $0x50] sm:$0xff]
    %v1631 = vld [vmem:[%s1619 + $0x58] sm:$0xff]
    %v1632 = vld [vmem:[%s1619 + $0x60] sm:$0xff]
    %v1633 = vld [vmem:[%s1619 + $0x68] sm:$0xff]
    %v1634 = vld [vmem:[%s1619 + $0x70] sm:$0xff]
    %v1635 = vld [vmem:[%s1619 + $0x78] sm:$0xff]
    %s1636 = scalar_lea.vmem %s8, 19
    %v1637 = vld [vmem:[%s1636] sm:$0x1]
    %v1639 = vlaneseq
    %v1640 = vshrl.u32 %v1639, 7
    %v1641 = vsub.s32 0, %v1640
    %v1642 = vrot.slane %v1637, %v1641
    %1644 = vmatprep.subr.mxu0 0.0
    %1645 = vmatpush1.msra.mxu0 %v1620
    %1646 = vmatprep.subr.mxu0 0.0
    %1647 = vmatpush1.msra.mxu0 %v1621
    %1648 = vmatprep.subr.mxu0 0.0
    %1649 = vmatpush1.msra.mxu0 %v1622
    %1650 = vmatprep.subr.mxu0 0.0
    %1651 = vmatpush1.msra.mxu0 %v1623
    %1652 = vmatprep.subr.mxu0 0.0
    %1653 = vmatpush1.msra.mxu0 %v1624
    %1654 = vmatprep.subr.mxu0 0.0
    %1655 = vmatpush1.msra.mxu0 %v1625
    %1656 = vmatprep.subr.mxu0 0.0
    %1657 = vmatpush1.msra.mxu0 %v1626
    %1658 = vmatprep.subr.mxu0 0.0
    %1659 = vmatpush1.msra.mxu0 %v1627
    %1660 = vmatprep.subr.mxu0 0.0
    %1661 = vmatpush1.msra.mxu0 %v1628
    %1662 = vmatprep.subr.mxu0 0.0
    %1663 = vmatpush1.msra.mxu0 %v1629
    %1664 = vmatprep.subr.mxu0 0.0
    %1665 = vmatpush1.msra.mxu0 %v1630
    %1666 = vmatprep.subr.mxu0 0.0
    %1667 = vmatpush1.msra.mxu0 %v1631
    %1668 = vmatprep.subr.mxu0 0.0
    %1669 = vmatpush1.msra.mxu0 %v1632
    %1670 = vmatprep.subr.mxu0 0.0
    %1671 = vmatpush1.msra.mxu0 %v1633
    %1672 = vmatprep.subr.mxu0 0.0
    %1673 = vmatpush1.msra.mxu0 %v1634
    %1674 = vmatprep.subr.mxu0 0.0
    %1675 = vmatpush1.msra.mxu0 %v1635
    %1676 = vmatprep.subr.mxu0 0.0
    %1677 = vmatpush1.msra.mxu0 0.0
    %1678 = vmatprep.subr.mxu0 0.0
    %1679 = vmatpush1.msra.mxu0 0.0
    %1680 = vmatprep.subr.mxu0 0.0
    %1681 = vmatpush1.msra.mxu0 0.0
    %1682 = vmatprep.subr.mxu0 0.0
    %1683 = vmatpush1.msra.mxu0 0.0
    %1684 = vmatprep.subr.mxu0 0.0
    %1685 = vmatpush1.msra.mxu0 0.0
    %1686 = vmatprep.subr.mxu0 0.0
    %1687 = vmatpush1.msra.mxu0 0.0
    %1688 = vmatprep.subr.mxu0 0.0
    %1689 = vmatpush1.msra.mxu0 0.0
    %1690 = vmatprep.subr.mxu0 0.0
    %1691 = vmatpush1.msra.mxu0 0.0
    %1692 = vmatprep.subr.mxu0 0.0
    %1693 = vmatpush1.msra.mxu0 0.0
    %1694 = vmatprep.subr.mxu0 0.0
    %1695 = vmatpush1.msra.mxu0 0.0
    %1696 = vmatprep.subr.mxu0 0.0
    %1697 = vmatpush1.msra.mxu0 0.0
    %1698 = vmatprep.subr.mxu0 0.0
    %1699 = vmatpush1.msra.mxu0 0.0
    %1700 = vmatprep.subr.mxu0 0.0
    %1701 = vmatpush1.msra.mxu0 0.0
    %1702 = vmatprep.subr.mxu0 0.0
    %1703 = vmatpush1.msra.mxu0 0.0
    %1704 = vmatprep.subr.mxu0 0.0
    %1705 = vmatpush1.msra.mxu0 0.0
    %1706 = vmatprep.subr.mxu0 0.0
    %1707 = vmatpush1.msra.mxu0 0.0
    %1708 = vmatprep.mubr.f32.mxu0 0.0
    %1709 = vmatmul.mubr.f32.gmra.mrb[0].mxu0 %v1618
    %v1710 = vpop.f32.mrb[0].mxu0
    %v1711 = vadd.f32 %v1642, %v1710
    %v1712 = vpop.f32.mrb[0].mxu0
    %1713 = vdwg.mxu0
    %1714 = vst [vmem:[%s9] sm:$0xff] %v1711
    // Predicated region
    $region50: #{forward.1} parent=1 // pred_check
      _
    $region51: #{forward.1} parent=1 // pred_check_branch
      %1716 = sbr.rel (0) target = $region53
    $region52: #{forward.1} parent=1 // pred_region
      _
    $region53: #{forward.1} parent=1 // pred_fallthru
      _
    // Predicated region
    $region54: #{forward.1} parent=1 // pred_check
      _
    $region55: #{forward.1} parent=1 // pred_check_branch
      %1718 = sbr.rel (0) target = $region57
    $region56: #{forward.1} parent=1 // pred_region
      _
    $region57: #{forward.1} parent=1 // pred_fallthru
      _
    %1719 = vsyncpa [#allocation3], 1
    %1720 = vsyncpa [#allocation5], 1

</llo_original>
